<compile_context>
chip_gen: v7x
topology: tpu7x:2x2x1
jax: 0.10.0
libtpu: 0.0.40
codegen_flags: <defaults>
</compile_context>

<pallas_src>
import functools

import numpy as np
import jax
import jax.numpy as jnp
from jax.experimental import pallas as pl
from jax.experimental.pallas import tpu as pltpu


# ----------------------------------------------------------------------------
# In-kernel stratified layer norm on a (B*n_feat, T) slab (rows = (sample,feat))
# ----------------------------------------------------------------------------

def _stratified_ln_slab(slab, n_samples, n_feat):
    """Per subject group (n_samples consecutive samples) and per feature row:
    (x - mean) / (unbiased_std + 1e-3), stats over (samples-in-group x time).
    Matches the torch stratified_layerNorm reference."""
    rows, T = slab.shape
    B = rows // n_feat
    n_subs = B // n_samples
    n = n_samples * T
    pieces = []
    for g in range(n_subs):
        base = g * n_samples * n_feat
        samp = [slab[base + b * n_feat: base + (b + 1) * n_feat, :]
                for b in range(n_samples)]
        s = samp[0].sum(axis=1, keepdims=True)
        for b in range(1, n_samples):
            s = s + samp[b].sum(axis=1, keepdims=True)
        mu = s / n                                               # (n_feat, 1)
        centered = [sb - mu for sb in samp]
        v = (centered[0] * centered[0]).sum(axis=1, keepdims=True)
        for b in range(1, n_samples):
            v = v + (centered[b] * centered[b]).sum(axis=1, keepdims=True)
        inv = 1.0 / (jnp.sqrt(v / (n - 1)) + 0.001)
        pieces.extend(cb * inv for cb in centered)
    if len(pieces) == 1:
        return pieces[0]
    return jnp.concatenate(pieces, axis=0)


# ----------------------------------------------------------------------------
# The single fused kernel (whole batch, whole network, one invocation)
# ----------------------------------------------------------------------------

def _fused_kernel(x_ref, wtr_ref, wsp_ref, bh_ref, pmat_ref,
                  m1_ref, b1_ref, m2_ref, b2_ref,
                  pooled_ref, out_ref, xp_ref,
                  *, pad, B, n_samples, do_initial, do_middle1, do_middle2):
    # x_ref    : (B*n_ch, T)            input slab, rows (sample, EEG channel)
    # wtr_ref  : (Kt, B*n_ms, 1)        per-row timeConv taps
    # wsp_ref  : (B*n_ms, B*n_ch)       block-diagonal spatialConv matrix
    # bh_ref   : (B*n_ms, 1)            spatial bias with timeConv bias folded in
    # pmat_ref : (T1, T2)               average-pool matrix
    # m1_ref   : (Ks, B*C1, B*n_ms)     grouped timeConv1 as permuted diagonals
    # b1_ref   : (B*C1, 1)
    # m2_ref   : (Ks, B*C2, B*C1)       grouped timeConv2 as permuted diagonals
    # b2_ref   : (B*C2, 1)
    # pooled_ref: (B*n_ms, T2)          pooled features (saveFea output)
    # out_ref  : (B*C2, T4)             final features (PyTorch channel order)
    # xp_ref   : (B*n_ch, T + 2*pad)    VMEM scratch, zero-padded input
    Kt = wtr_ref.shape[0]
    Ks = m1_ref.shape[0]
    rows_x, T = x_ref.shape
    n_ch = rows_x // B
    Tp = xp_ref.shape[1]
    T1 = Tp - Kt + 1
    T2 = pmat_ref.shape[1]
    T3 = T2 - Ks + 1
    T4 = T3 - Ks + 1
    n_ms = wsp_ref.shape[0] // B
    C1 = m1_ref.shape[1] // B
    C2 = m2_ref.shape[1] // B

    x = x_ref[...]
    if do_initial:
        x = _stratified_ln_slab(x, n_samples, n_ch)

    # zero-pad the time axis inside the kernel (replaces jnp.pad in the wrapper)
    xp_ref[...] = jnp.zeros_like(xp_ref)
    xp_ref[:, pad:pad + T] = x

    # spatialConv as one block-diagonal MXU matmul, applied (exactly) before the
    # purely-temporal timeConv since both are linear and the padding is zero.
    z = jnp.dot(wsp_ref[...], xp_ref[...],
                preferred_element_type=jnp.float32)              # (B*n_ms, Tp)

    # timeConv (per-row scalar taps) + fused (spatial + time) bias + ReLU
    acc = z[:, 0:T1] * wtr_ref[0]
    for k in range(1, Kt):
        acc = acc + z[:, k:k + T1] * wtr_ref[k]
    h = jnp.maximum(acc + bh_ref[...], 0.0)                      # (B*n_ms, T1)

    # AvgPool2d((1, pool)) over time as a single MXU matmul
    pooled = jnp.dot(h, pmat_ref[...],
                     preferred_element_type=jnp.float32)         # (B*n_ms, T2)
    pooled_ref[...] = pooled

    if do_middle1:
        pooled = _stratified_ln_slab(pooled, n_samples, n_ms)

    # grouped timeConv1: Ks permuted-diagonal matmuls; output rows come out
    # directly in the PyTorch channel order (b, c*multiFact + j1).
    a1 = b1_ref[...]
    for k in range(Ks):
        a1 = a1 + jnp.dot(m1_ref[k], pooled[:, k:k + T3],
                          preferred_element_type=jnp.float32)
    h1 = jnp.maximum(a1, 0.0)                                    # (B*C1, T3)

    # grouped timeConv2: same trick, PyTorch order (b, p1*multiFact + j2).
    a2 = b2_ref[...]
    for k in range(Ks):
        a2 = a2 + jnp.dot(m2_ref[k], h1[:, k:k + T4],
                          preferred_element_type=jnp.float32)
    out = jnp.maximum(a2, 0.0)                                   # (B*C2, T4)

    if do_middle2:
        out = _stratified_ln_slab(out, n_samples, C2)

    out_ref[...] = out


# ----------------------------------------------------------------------------
# One-time weight repacking (runs eagerly, outside the jitted forward)
# ----------------------------------------------------------------------------

def pack_inputs(params, *, B, T, avgPoolLen):
    wt, bt = params["wt"], params["bt"]              # (n_tF, Kt), (n_tF,)
    ws, bs = params["ws"], params["bs"]              # (n_tF, n_sF, n_ch), (n_tF, n_sF)
    w1, b1 = params["tc1_w"], params["tc1_b"]        # (n_ms, m, Ks), (n_ms, m)
    w2, b2 = params["tc2_w"], params["tc2_b"]        # (C1, m, Ks), (C1, m)
    n_tF, Kt = wt.shape
    n_sF, n_ch = ws.shape[1], ws.shape[2]
    n_ms = n_tF * n_sF
    m, Ks = w1.shape[1], w1.shape[2]
    C1, C2 = n_ms * m, n_ms * m * m
    pad = (Kt - 1) // 2
    T1 = T + 2 * pad - Kt + 1
    T2 = (T1 - avgPoolLen) // avgPoolLen + 1

    # per-row timeConv taps, rows ordered (sample, f*n_sF + s)
    wt_rows = jnp.tile(jnp.repeat(wt, n_sF, axis=0), (B, 1))      # (B*n_ms, Kt)
    wt_rows = jnp.transpose(wt_rows)[:, :, None]                  # (Kt, B*n_ms, 1)

    # block-diagonal spatialConv matrix: (b, f*n_sF+s) <- (b, c) with ws[f,s,c]
    blk = ws.reshape(n_ms, n_ch)
    eyeB = np.eye(B, dtype=np.float32)
    w_sp = (eyeB[:, None, :, None] * blk[None, :, None, :]
            ).reshape(B * n_ms, B * n_ch)

    # spatialConv bias with the timeConv bias folded through the spatial sum
    bias0 = bs + bt[:, None] * jnp.sum(ws, axis=-1)               # (n_tF, n_sF)
    bias_head = jnp.tile(bias0.reshape(n_ms), (B,))[:, None]      # (B*n_ms, 1)

    # average-pool matrix (pure numpy constant)
    s_i = np.arange(T1)[:, None]
    t_i = np.arange(T2)[None, :]
    pmat = (((s_i >= t_i * avgPoolLen) & (s_i < (t_i + 1) * avgPoolLen))
            .astype(np.float32) / float(avgPoolLen))              # (T1, T2)

    # grouped timeConv1 as Ks permuted-diagonal matrices; output row
    # r = b*C1 + c*m + j1 (PyTorch order) reads input row b*n_ms + c.
    r1 = np.arange(B * C1)
    b_r, rem = r1 // C1, r1 % C1
    c_r, j_r = rem // m, rem % m
    oh1 = np.zeros((B * C1, B * n_ms), np.float32)
    oh1[r1, b_r * n_ms + c_r] = 1.0
    m1 = oh1[None] * jnp.transpose(w1[c_r, j_r, :])[:, :, None]   # (Ks, B*C1, B*n_ms)
    b1v = b1[c_r, j_r][:, None]                                   # (B*C1, 1)

    # grouped timeConv2; output row r = b*C2 + p1*m + j2 reads row b*C1 + p1.
    r2 = np.arange(B * C2)
    b2_r, rem2 = r2 // C2, r2 % C2
    p_r, j2_r = rem2 // m, rem2 % m
    oh2 = np.zeros((B * C2, B * C1), np.float32)
    oh2[r2, b2_r * C1 + p_r] = 1.0
    m2 = oh2[None] * jnp.transpose(w2[p_r, j2_r, :])[:, :, None]  # (Ks, B*C2, B*C1)
    b2v = b2[p_r, j2_r][:, None]                                  # (B*C2, 1)

    return (wt_rows, w_sp, bias_head, pmat, m1, b1v, m2, b2v)


# ----------------------------------------------------------------------------
# Forward pass (== ConvNet_complete_baseline.forward):  reshape -> 1 pallas_call
# ----------------------------------------------------------------------------

def convnet_forward(x, packed, *, stratified="", saveFea=False):
    (wt_rows, w_sp, bias_head, pmat, m1, b1v, m2, b2v) = packed
    B, _, n_ch, T = x.shape
    Kt = wt_rows.shape[0]
    pad = (Kt - 1) // 2
    Tp = T + 2 * pad
    T2 = pmat.shape[1]
    Ks = m1.shape[0]
    n_ms = w_sp.shape[0] // B
    C2 = m2.shape[1] // B
    T3 = T2 - Ks + 1
    T4 = T3 - Ks + 1
    n_samples = max(B // 2, 1)

    x_slab = x.reshape(B * n_ch, T)

    kern = functools.partial(
        _fused_kernel, pad=pad, B=B, n_samples=n_samples,
        do_initial=("initial" in stratified),
        do_middle1=("middle1" in stratified) and (not saveFea),
        do_middle2=("middle2" in stratified) and (not saveFea))

    vspec = pl.BlockSpec(memory_space=pltpu.MemorySpace.VMEM)
    pooled_slab, out_slab = pl.pallas_call(
        kern,
        out_shape=(jax.ShapeDtypeStruct((B * n_ms, T2), jnp.float32),
                   jax.ShapeDtypeStruct((B * C2, T4), jnp.float32)),
        in_specs=[vspec] * 9,
        out_specs=(vspec, vspec),
        scratch_shapes=[pltpu.VMEM((B * n_ch, Tp), jnp.float32)],
    )(x_slab, wt_rows, w_sp, bias_head, pmat, m1, b1v, m2, b2v)

    if saveFea:
        return pooled_slab.reshape(B, -1)
    return out_slab.reshape(B, -1)


# ----------------------------------------------------------------------------
# Pure-JAX (non-Pallas) reference of the baseline path, for correctness check
# ----------------------------------------------------------------------------

def reference_forward(x, params, *, avgPoolLen):
    wt, bt = params["wt"], params["bt"]
    ws, bs = params["ws"], params["bs"]
    w1, b1 = params["tc1_w"], params["tc1_b"]
    w2, b2 = params["tc2_w"], params["tc2_b"]
    n_tF, Kt = wt.shape
    n_sF, n_ch = ws.shape[1], ws.shape[2]
    n_ms = n_tF * n_sF
    m, Ks = w1.shape[1], w1.shape[2]
    C1 = n_ms * m
    B, _, _, T = x.shape
    pad = (Kt - 1) // 2
    xp = jnp.pad(x[:, 0], ((0, 0), (0, 0), (pad, pad)))           # (B, n_ch, Tp)
    T1 = T + 2 * pad - Kt + 1

    tc = jnp.stack(
        [sum(wt[f, k] * xp[:, :, k:k + T1] for k in range(Kt)) + bt[f]
         for f in range(n_tF)], axis=1)                           # (B, n_tF, n_ch, T1)
    sp = jnp.stack(
        [(tc[:, f] * ws[f, s][None, :, None]).sum(axis=1) + bs[f, s]
         for f in range(n_tF) for s in range(n_sF)], axis=1)      # (B, n_ms, T1)
    sp = jnp.maximum(sp, 0.0)
    T2 = (T1 - avgPoolLen) // avgPoolLen + 1
    pooled = sp[:, :, :T2 * avgPoolLen].reshape(B, n_ms, T2, avgPoolLen).mean(-1)

    T3 = T2 - Ks + 1
    h1 = jnp.stack(
        [sum(w1[c, j, k] * pooled[:, c, k:k + T3] for k in range(Ks)) + b1[c, j]
         for c in range(n_ms) for j in range(m)], axis=1)         # (B, C1, T3)
    h1 = jnp.maximum(h1, 0.0)
    T4 = T3 - Ks + 1
    out = jnp.stack(
        [sum(w2[p, j, k] * h1[:, p, k:k + T4] for k in range(Ks)) + b2[p, j]
         for p in range(C1) for j in range(m)], axis=1)           # (B, C2, T4)
    out = jnp.maximum(out, 0.0)
    return out.reshape(B, -1), pooled.reshape(B, -1)


# ----------------------------------------------------------------------------
# Deterministic synthetic parameters (PyTorch-natural layouts)
# ----------------------------------------------------------------------------

def init_params(key, *, n_timeFilters, timeFilterLen, n_spatialFilters,
                n_channs, timeSmootherLen, multiFact):
    ks = jax.random.split(key, 8)
    n_ms = n_timeFilters * n_spatialFilters
    C1 = n_ms * multiFact

    def w(k, shape, fan_in):
        return jax.random.normal(k, shape, jnp.float32) / np.sqrt(float(fan_in))

    return {
        "wt": w(ks[0], (n_timeFilters, timeFilterLen), timeFilterLen),
        "bt": 0.05 * jax.random.normal(ks[1], (n_timeFilters,), jnp.float32),
        "ws": w(ks[2], (n_timeFilters, n_spatialFilters, n_channs), n_channs),
        "bs": 0.05 * jax.random.normal(ks[3], (n_timeFilters, n_spatialFilters), jnp.float32),
        "tc1_w": w(ks[4], (n_ms, multiFact, timeSmootherLen), timeSmootherLen),
        "tc1_b": 0.05 * jax.random.normal(ks[5], (n_ms, multiFact), jnp.float32),
        "tc2_w": w(ks[6], (C1, multiFact, timeSmootherLen), timeSmootherLen),
        "tc2_b": 0.05 * jax.random.normal(ks[7], (C1, multiFact), jnp.float32),
    }


# ----------------------------------------------------------------------------
# main
# ----------------------------------------------------------------------------

if __name__ == "__main__":
    B, n_channs, T = 2, 16, 128
    n_timeFilters, timeFilterLen = 4, 5
    n_spatialFilters = 4
    avgPoolLen, timeSmootherLen, multiFact = 4, 3, 2
    stratified, saveFea = "", False        # baseline configuration

    key = jax.random.PRNGKey(0)
    k_param, k_x = jax.random.split(key)
    params = init_params(
        k_param,
        n_timeFilters=n_timeFilters, timeFilterLen=timeFilterLen,
        n_spatialFilters=n_spatialFilters, n_channs=n_channs,
        timeSmootherLen=timeSmootherLen, multiFact=multiFact)
    x = jax.random.normal(k_x, (B, 1, n_channs, T), jnp.float32)

    packed = pack_inputs(params, B=B, T=T, avgPoolLen=avgPoolLen)

    fwd = jax.jit(functools.partial(convnet_forward,
                                    stratified=stratified, saveFea=saveFea))
    out = jax.block_until_ready(fwd(x, packed))

    n_ms = n_timeFilters * n_spatialFilters
    T4 = T // avgPoolLen - 2 * (timeSmootherLen - 1)
    assert out.shape == (B, n_ms * multiFact * multiFact * T4), out.shape
    assert bool(jnp.all(jnp.isfinite(out)))

    # cross-check the fused kernel against a straightforward pure-JAX reference
    ref_out, ref_pooled = jax.jit(
        functools.partial(reference_forward, avgPoolLen=avgPoolLen))(x, params)
    np.testing.assert_allclose(np.asarray(out), np.asarray(ref_out),
                               rtol=2e-3, atol=2e-3)

    # saveFea=True path returns the pooled features
    fea = jax.block_until_ready(jax.jit(functools.partial(
        convnet_forward, stratified="", saveFea=True))(x, packed))
    np.testing.assert_allclose(np.asarray(fea), np.asarray(ref_pooled),
                               rtol=2e-3, atol=2e-3)

    print("KERNEL_OK")
</pallas_src>

<mosaic_0001>
module attributes {stable_mosaic.version = 11 : i64} {
  func.func @_fused_kernel(%arg0: memref<32x128xf32, #tpu.memory_space<vmem>>, %arg1: memref<5x32x1xf32, #tpu.memory_space<vmem>>, %arg2: memref<32x32xf32, #tpu.memory_space<vmem>>, %arg3: memref<32x1xf32, #tpu.memory_space<vmem>>, %arg4: memref<128x32xf32, #tpu.memory_space<vmem>>, %arg5: memref<3x64x32xf32, #tpu.memory_space<vmem>>, %arg6: memref<64x1xf32, #tpu.memory_space<vmem>>, %arg7: memref<3x128x64xf32, #tpu.memory_space<vmem>>, %arg8: memref<128x1xf32, #tpu.memory_space<vmem>>, %arg9: memref<32x32xf32, #tpu.memory_space<vmem>>, %arg10: memref<128x28xf32, #tpu.memory_space<vmem>>, %arg11: memref<32x132xf32, #tpu.memory_space<vmem>>) attributes {dimension_semantics = [], scalar_prefetch = 0 : i64, scratch_operands = 1 : i64, tpu.core_type = #tpu.core_type<tc>} {
    %c0 = arith.constant 0 : index
    %c0_0 = arith.constant 0 : index
    %0 = vector.load %arg0[%c0, %c0_0] : memref<32x128xf32, #tpu.memory_space<vmem>>, vector<32x128xf32>
    %cst = arith.constant 0.000000e+00 : f32
    %1 = vector.broadcast %cst : f32 to vector<32x132xf32>
    %c0_1 = arith.constant 0 : index
    %c0_2 = arith.constant 0 : index
    %2 = vector.load %arg11[%c0_1, %c0_2] : memref<32x132xf32, #tpu.memory_space<vmem>>, vector<32x132xf32>
    tpu.vector_store %arg11[%c0_1, %c0_2], %1 {strides = array<i32>} : memref<32x132xf32, #tpu.memory_space<vmem>>, vector<32x132xf32>,
    %c0_3 = arith.constant 0 : index
    %c2 = arith.constant 2 : index
    %3 = vector.load %arg11[%c0_3, %c2] : memref<32x132xf32, #tpu.memory_space<vmem>>, vector<32x128xf32>
    tpu.vector_store %arg11[%c0_3, %c2], %0 {strides = array<i32>} : memref<32x132xf32, #tpu.memory_space<vmem>>, vector<32x128xf32>,
    %c0_4 = arith.constant 0 : index
    %c0_5 = arith.constant 0 : index
    %4 = vector.load %arg2[%c0_4, %c0_5] : memref<32x32xf32, #tpu.memory_space<vmem>>, vector<32x32xf32>
    %c0_6 = arith.constant 0 : index
    %c0_7 = arith.constant 0 : index
    %5 = vector.load %arg11[%c0_6, %c0_7] : memref<32x132xf32, #tpu.memory_space<vmem>>, vector<32x132xf32>
    %cst_8 = arith.constant dense<0.000000e+00> : vector<32x132xf32>
    %6 = tpu.matmul %4, %5, %cst_8 {dimension_numbers = #tpu.dot_dimension_numbers<[1], [0], [0], [1], [0, 0, 1, 1], [], []>} : vector<32x32xf32>, vector<32x132xf32>, vector<32x132xf32> -> vector<32x132xf32>
    %7 = vector.extract_strided_slice %6 {offsets = [0, 0], sizes = [32, 128], strides = [1, 1]} : vector<32x132xf32> to vector<32x128xf32>
    %c0_9 = arith.constant 0 : index
    %c0_10 = arith.constant 0 : index
    %c0_11 = arith.constant 0 : index
    %8 = vector.load %arg1[%c0_9, %c0_10, %c0_11] : memref<5x32x1xf32, #tpu.memory_space<vmem>>, vector<1x32x1xf32>
    %9 = vector.shape_cast %8 : vector<1x32x1xf32> to vector<32x1xf32>
    %10 = vector.broadcast %9 : vector<32x1xf32> to vector<32x128xf32>
    %11 = arith.mulf %7, %10 : vector<32x128xf32>
    %12 = vector.extract_strided_slice %6 {offsets = [0, 1], sizes = [32, 128], strides = [1, 1]} : vector<32x132xf32> to vector<32x128xf32>
    %c1 = arith.constant 1 : index
    %c0_12 = arith.constant 0 : index
    %c0_13 = arith.constant 0 : index
    %13 = vector.load %arg1[%c1, %c0_12, %c0_13] : memref<5x32x1xf32, #tpu.memory_space<vmem>>, vector<1x32x1xf32>
    %14 = vector.shape_cast %13 : vector<1x32x1xf32> to vector<32x1xf32>
    %15 = vector.broadcast %14 : vector<32x1xf32> to vector<32x128xf32>
    %16 = arith.mulf %12, %15 : vector<32x128xf32>
    %17 = arith.addf %11, %16 : vector<32x128xf32>
    %18 = vector.extract_strided_slice %6 {offsets = [0, 2], sizes = [32, 128], strides = [1, 1]} : vector<32x132xf32> to vector<32x128xf32>
    %c2_14 = arith.constant 2 : index
    %c0_15 = arith.constant 0 : index
    %c0_16 = arith.constant 0 : index
    %19 = vector.load %arg1[%c2_14, %c0_15, %c0_16] : memref<5x32x1xf32, #tpu.memory_space<vmem>>, vector<1x32x1xf32>
    %20 = vector.shape_cast %19 : vector<1x32x1xf32> to vector<32x1xf32>
    %21 = vector.broadcast %20 : vector<32x1xf32> to vector<32x128xf32>
    %22 = arith.mulf %18, %21 : vector<32x128xf32>
    %23 = arith.addf %17, %22 : vector<32x128xf32>
    %24 = vector.extract_strided_slice %6 {offsets = [0, 3], sizes = [32, 128], strides = [1, 1]} : vector<32x132xf32> to vector<32x128xf32>
    %c3 = arith.constant 3 : index
    %c0_17 = arith.constant 0 : index
    %c0_18 = arith.constant 0 : index
    %25 = vector.load %arg1[%c3, %c0_17, %c0_18] : memref<5x32x1xf32, #tpu.memory_space<vmem>>, vector<1x32x1xf32>
    %26 = vector.shape_cast %25 : vector<1x32x1xf32> to vector<32x1xf32>
    %27 = vector.broadcast %26 : vector<32x1xf32> to vector<32x128xf32>
    %28 = arith.mulf %24, %27 : vector<32x128xf32>
    %29 = arith.addf %23, %28 : vector<32x128xf32>
    %30 = vector.extract_strided_slice %6 {offsets = [0, 4], sizes = [32, 128], strides = [1, 1]} : vector<32x132xf32> to vector<32x128xf32>
    %c4 = arith.constant 4 : index
    %c0_19 = arith.constant 0 : index
    %c0_20 = arith.constant 0 : index
    %31 = vector.load %arg1[%c4, %c0_19, %c0_20] : memref<5x32x1xf32, #tpu.memory_space<vmem>>, vector<1x32x1xf32>
    %32 = vector.shape_cast %31 : vector<1x32x1xf32> to vector<32x1xf32>
    %33 = vector.broadcast %32 : vector<32x1xf32> to vector<32x128xf32>
    %34 = arith.mulf %30, %33 : vector<32x128xf32>
    %35 = arith.addf %29, %34 : vector<32x128xf32>
    %c0_21 = arith.constant 0 : index
    %c0_22 = arith.constant 0 : index
    %36 = vector.load %arg3[%c0_21, %c0_22] : memref<32x1xf32, #tpu.memory_space<vmem>>, vector<32x1xf32>
    %37 = vector.broadcast %36 : vector<32x1xf32> to vector<32x128xf32>
    %38 = arith.addf %35, %37 : vector<32x128xf32>
    %cst_23 = arith.constant 0.000000e+00 : f32
    %39 = vector.broadcast %cst_23 : f32 to vector<32x128xf32>
    %40 = arith.maximumf %38, %39 : vector<32x128xf32>
    %c0_24 = arith.constant 0 : index
    %c0_25 = arith.constant 0 : index
    %41 = vector.load %arg4[%c0_24, %c0_25] : memref<128x32xf32, #tpu.memory_space<vmem>>, vector<128x32xf32>
    %cst_26 = arith.constant dense<0.000000e+00> : vector<32x32xf32>
    %42 = tpu.matmul %40, %41, %cst_26 {dimension_numbers = #tpu.dot_dimension_numbers<[1], [0], [0], [1], [0, 0, 1, 1], [], []>} : vector<32x128xf32>, vector<128x32xf32>, vector<32x32xf32> -> vector<32x32xf32>
    %c0_27 = arith.constant 0 : index
    %c0_28 = arith.constant 0 : index
    %43 = vector.load %arg9[%c0_27, %c0_28] : memref<32x32xf32, #tpu.memory_space<vmem>>, vector<32x32xf32>
    tpu.vector_store %arg9[%c0_27, %c0_28], %42 {strides = array<i32>} : memref<32x32xf32, #tpu.memory_space<vmem>>, vector<32x32xf32>,
    %c0_29 = arith.constant 0 : index
    %c0_30 = arith.constant 0 : index
    %44 = vector.load %arg6[%c0_29, %c0_30] : memref<64x1xf32, #tpu.memory_space<vmem>>, vector<64x1xf32>
    %c0_31 = arith.constant 0 : index
    %c0_32 = arith.constant 0 : index
    %c0_33 = arith.constant 0 : index
    %45 = vector.load %arg5[%c0_31, %c0_32, %c0_33] : memref<3x64x32xf32, #tpu.memory_space<vmem>>, vector<1x64x32xf32>
    %46 = vector.shape_cast %45 : vector<1x64x32xf32> to vector<64x32xf32>
    %47 = vector.extract_strided_slice %42 {offsets = [0, 0], sizes = [32, 30], strides = [1, 1]} : vector<32x32xf32> to vector<32x30xf32>
    %cst_34 = arith.constant dense<0.000000e+00> : vector<64x30xf32>
    %48 = tpu.matmul %46, %47, %cst_34 {dimension_numbers = #tpu.dot_dimension_numbers<[1], [0], [0], [1], [0, 0, 1, 1], [], []>} : vector<64x32xf32>, vector<32x30xf32>, vector<64x30xf32> -> vector<64x30xf32>
    %49 = vector.broadcast %44 : vector<64x1xf32> to vector<64x30xf32>
    %50 = arith.addf %49, %48 : vector<64x30xf32>
    %c1_35 = arith.constant 1 : index
    %c0_36 = arith.constant 0 : index
    %c0_37 = arith.constant 0 : index
    %51 = vector.load %arg5[%c1_35, %c0_36, %c0_37] : memref<3x64x32xf32, #tpu.memory_space<vmem>>, vector<1x64x32xf32>
    %52 = vector.shape_cast %51 : vector<1x64x32xf32> to vector<64x32xf32>
    %53 = vector.extract_strided_slice %42 {offsets = [0, 1], sizes = [32, 30], strides = [1, 1]} : vector<32x32xf32> to vector<32x30xf32>
    %cst_38 = arith.constant dense<0.000000e+00> : vector<64x30xf32>
    %54 = tpu.matmul %52, %53, %cst_38 {dimension_numbers = #tpu.dot_dimension_numbers<[1], [0], [0], [1], [0, 0, 1, 1], [], []>} : vector<64x32xf32>, vector<32x30xf32>, vector<64x30xf32> -> vector<64x30xf32>
    %55 = arith.addf %50, %54 : vector<64x30xf32>
    %c2_39 = arith.constant 2 : index
    %c0_40 = arith.constant 0 : index
    %c0_41 = arith.constant 0 : index
    %56 = vector.load %arg5[%c2_39, %c0_40, %c0_41] : memref<3x64x32xf32, #tpu.memory_space<vmem>>, vector<1x64x32xf32>
    %57 = vector.shape_cast %56 : vector<1x64x32xf32> to vector<64x32xf32>
    %58 = vector.extract_strided_slice %42 {offsets = [0, 2], sizes = [32, 30], strides = [1, 1]} : vector<32x32xf32> to vector<32x30xf32>
    %cst_42 = arith.constant dense<0.000000e+00> : vector<64x30xf32>
    %59 = tpu.matmul %57, %58, %cst_42 {dimension_numbers = #tpu.dot_dimension_numbers<[1], [0], [0], [1], [0, 0, 1, 1], [], []>} : vector<64x32xf32>, vector<32x30xf32>, vector<64x30xf32> -> vector<64x30xf32>
    %60 = arith.addf %55, %59 : vector<64x30xf32>
    %cst_43 = arith.constant 0.000000e+00 : f32
    %61 = vector.broadcast %cst_43 : f32 to vector<64x30xf32>
    %62 = arith.maximumf %60, %61 : vector<64x30xf32>
    %c0_44 = arith.constant 0 : index
    %c0_45 = arith.constant 0 : index
    %63 = vector.load %arg8[%c0_44, %c0_45] : memref<128x1xf32, #tpu.memory_space<vmem>>, vector<128x1xf32>
    %c0_46 = arith.constant 0 : index
    %c0_47 = arith.constant 0 : index
    %c0_48 = arith.constant 0 : index
    %64 = vector.load %arg7[%c0_46, %c0_47, %c0_48] : memref<3x128x64xf32, #tpu.memory_space<vmem>>, vector<1x128x64xf32>
    %65 = vector.shape_cast %64 : vector<1x128x64xf32> to vector<128x64xf32>
    %66 = vector.extract_strided_slice %62 {offsets = [0, 0], sizes = [64, 28], strides = [1, 1]} : vector<64x30xf32> to vector<64x28xf32>
    %cst_49 = arith.constant dense<0.000000e+00> : vector<128x28xf32>
    %67 = tpu.matmul %65, %66, %cst_49 {dimension_numbers = #tpu.dot_dimension_numbers<[1], [0], [0], [1], [0, 0, 1, 1], [], []>} : vector<128x64xf32>, vector<64x28xf32>, vector<128x28xf32> -> vector<128x28xf32>
    %68 = vector.broadcast %63 : vector<128x1xf32> to vector<128x28xf32>
    %69 = arith.addf %68, %67 : vector<128x28xf32>
    %c1_50 = arith.constant 1 : index
    %c0_51 = arith.constant 0 : index
    %c0_52 = arith.constant 0 : index
    %70 = vector.load %arg7[%c1_50, %c0_51, %c0_52] : memref<3x128x64xf32, #tpu.memory_space<vmem>>, vector<1x128x64xf32>
    %71 = vector.shape_cast %70 : vector<1x128x64xf32> to vector<128x64xf32>
    %72 = vector.extract_strided_slice %62 {offsets = [0, 1], sizes = [64, 28], strides = [1, 1]} : vector<64x30xf32> to vector<64x28xf32>
    %cst_53 = arith.constant dense<0.000000e+00> : vector<128x28xf32>
    %73 = tpu.matmul %71, %72, %cst_53 {dimension_numbers = #tpu.dot_dimension_numbers<[1], [0], [0], [1], [0, 0, 1, 1], [], []>} : vector<128x64xf32>, vector<64x28xf32>, vector<128x28xf32> -> vector<128x28xf32>
    %74 = arith.addf %69, %73 : vector<128x28xf32>
    %c2_54 = arith.constant 2 : index
    %c0_55 = arith.constant 0 : index
    %c0_56 = arith.constant 0 : index
    %75 = vector.load %arg7[%c2_54, %c0_55, %c0_56] : memref<3x128x64xf32, #tpu.memory_space<vmem>>, vector<1x128x64xf32>
    %76 = vector.shape_cast %75 : vector<1x128x64xf32> to vector<128x64xf32>
    %77 = vector.extract_strided_slice %62 {offsets = [0, 2], sizes = [64, 28], strides = [1, 1]} : vector<64x30xf32> to vector<64x28xf32>
    %cst_57 = arith.constant dense<0.000000e+00> : vector<128x28xf32>
    %78 = tpu.matmul %76, %77, %cst_57 {dimension_numbers = #tpu.dot_dimension_numbers<[1], [0], [0], [1], [0, 0, 1, 1], [], []>} : vector<128x64xf32>, vector<64x28xf32>, vector<128x28xf32> -> vector<128x28xf32>
    %79 = arith.addf %74, %78 : vector<128x28xf32>
    %cst_58 = arith.constant 0.000000e+00 : f32
    %80 = vector.broadcast %cst_58 : f32 to vector<128x28xf32>
    %81 = arith.maximumf %79, %80 : vector<128x28xf32>
    %c0_59 = arith.constant 0 : index
    %c0_60 = arith.constant 0 : index
    %82 = vector.load %arg10[%c0_59, %c0_60] : memref<128x28xf32, #tpu.memory_space<vmem>>, vector<128x28xf32>
    tpu.vector_store %arg10[%c0_59, %c0_60], %81 {strides = array<i32>} : memref<128x28xf32, #tpu.memory_space<vmem>>, vector<128x28xf32>,
    return
  }
}

</mosaic_0001>

<llo_original>
// kernel: convnet_forward.1
$region0: #{convnet_forward.1}
  #allocation0 [shape = 'u32[]', space=smem, size = 0x4, offset = 0x4, fixed_abs, tag = 'smem constant byte address 0x4 - core index']
  #allocation1 [shape = 'u32[144,128]{1,0:T(1,128)}', space=vmem, size = 0x12000, scoped, tag = 'internal scratch']
  #allocation2 [shape = 'f32[32,132]{1,0:T(8,128)}', space=vmem, size = 0x8000, scoped, tag = 'scratch operand']
  %s0 = inlined_call_operand.vmem [shape: f32[32,128], index: 0, kind: input, shape index: {}]
  %s1 = inlined_call_operand.vmem [shape: f32[5,32,1], index: 1, kind: input, shape index: {}]
  %s2 = inlined_call_operand.vmem [shape: f32[32,32], index: 2, kind: input, shape index: {}]
  %s3 = inlined_call_operand.vmem [shape: f32[32,1], index: 3, kind: input, shape index: {}]
  %s4 = inlined_call_operand.vmem [shape: f32[128,32], index: 4, kind: input, shape index: {}]
  %s5 = inlined_call_operand.vmem [shape: f32[3,64,32], index: 5, kind: input, shape index: {}]
  %s6 = inlined_call_operand.vmem [shape: f32[64,1], index: 6, kind: input, shape index: {}]
  %s7 = inlined_call_operand.vmem [shape: f32[3,128,64], index: 7, kind: input, shape index: {}]
  %s8 = inlined_call_operand.vmem [shape: f32[128,1], index: 8, kind: input, shape index: {}]
  %s9 = inlined_call_operand.hbm [shape: f32[32,32], index: 9, kind: output, shape index: {0}]
  %s10 = inlined_call_operand.vmem [shape: f32[128,28], index: 10, kind: output, shape index: {1}]
  %11 = xla_tuple %s9, %s10
  %s12 = sld [smem:[#allocation0]]
  $region54: #{convnet_forward.1} parent=0
    _
  %s14 = ssub.s32 1, %s12
  %s15 = scalar_select 0, %s14, %s12
  $region1: #{convnet_forward.1} parent=0
    #allocation3 [shape = 'u8[16384]{0}', space=vmem, size = 0x4000, scoped, tag = 'output window, operand 0, single buffered']
    #allocation4 [shape = 's32[1]{0}', space=sflag, size = 0x4, scoped, tag = 'scoped memory for convnet_forward.1']
    %16 = vsyncpa [#allocation4], 0
    // Predicated region
    $region2: #{convnet_forward.1} parent=1 // pred_check
      _
    $region3: #{convnet_forward.1} parent=1 // pred_check_branch
      %18 = sbr.rel (0) target = $region5
    $region4: #{convnet_forward.1} parent=1 // pred_region
      _
    $region5: #{convnet_forward.1} parent=1 // pred_fallthru
      _
    // Predicated region
    $region6: #{convnet_forward.1} parent=1 // pred_check
      _
    $region7: #{convnet_forward.1} parent=1 // pred_check_branch
      %20 = sbr.rel (0) target = $region9
    $region8: #{convnet_forward.1} parent=1 // pred_region
      _
    $region9: #{convnet_forward.1} parent=1 // pred_fallthru
      _
    // Predicated region
    $region10: #{convnet_forward.1} parent=1 // pred_check
      _
    $region11: #{convnet_forward.1} parent=1 // pred_check_branch
      %22 = sbr.rel (0) target = $region13
    $region12: #{convnet_forward.1} parent=1 // pred_region
      _
    $region13: #{convnet_forward.1} parent=1 // pred_fallthru
      _
    // Predicated region
    $region14: #{convnet_forward.1} parent=1 // pred_check
      _
    $region15: #{convnet_forward.1} parent=1 // pred_check_branch
      %24 = sbr.rel (0) target = $region17
    $region16: #{convnet_forward.1} parent=1 // pred_region
      _
    $region17: #{convnet_forward.1} parent=1 // pred_fallthru
      _
    // Predicated region
    $region18: #{convnet_forward.1} parent=1 // pred_check
      _
    $region19: #{convnet_forward.1} parent=1 // pred_check_branch
      %26 = sbr.rel (0) target = $region21
    $region20: #{convnet_forward.1} parent=1 // pred_region
      _
    $region21: #{convnet_forward.1} parent=1 // pred_fallthru
      _
    // Predicated region
    $region22: #{convnet_forward.1} parent=1 // pred_check
      _
    $region23: #{convnet_forward.1} parent=1 // pred_check_branch
      %28 = sbr.rel (0) target = $region25
    $region24: #{convnet_forward.1} parent=1 // pred_region
      _
    $region25: #{convnet_forward.1} parent=1 // pred_fallthru
      _
    // Predicated region
    $region26: #{convnet_forward.1} parent=1 // pred_check
      _
    $region27: #{convnet_forward.1} parent=1 // pred_check_branch
      %30 = sbr.rel (0) target = $region29
    $region28: #{convnet_forward.1} parent=1 // pred_region
      _
    $region29: #{convnet_forward.1} parent=1 // pred_fallthru
      _
    // Predicated region
    $region30: #{convnet_forward.1} parent=1 // pred_check
      _
    $region31: #{convnet_forward.1} parent=1 // pred_check_branch
      %32 = sbr.rel (0) target = $region33
    $region32: #{convnet_forward.1} parent=1 // pred_region
      _
    $region33: #{convnet_forward.1} parent=1 // pred_fallthru
      _
    // Predicated region
    $region34: #{convnet_forward.1} parent=1 // pred_check
      _
    $region35: #{convnet_forward.1} parent=1 // pred_check_branch
      %34 = sbr.rel (0) target = $region37
    $region36: #{convnet_forward.1} parent=1 // pred_region
      _
    $region37: #{convnet_forward.1} parent=1 // pred_fallthru
      _
    %v35 = vld [vmem:[%s0] sm:$0xff]
    %v36 = vld [vmem:[%s0 + $0x8] sm:$0xff]
    %v37 = vld [vmem:[%s0 + $0x10] sm:$0xff]
    %v38 = vld [vmem:[%s0 + $0x18] sm:$0xff]
    %39 = vst [vmem:[#allocation2] sm:$0xff] 0.0
    %vm40 = vcmask 31744
    %41 = vst.msk [vmem:[#allocation2 + $0x8] sm:$0xff] %vm40, 0.0
    %42 = vst [vmem:[#allocation2 + $0x10] sm:$0xff] 0.0
    %43 = vst.msk [vmem:[#allocation2 + $0x18] sm:$0xff] %vm40, 0.0
    %44 = vst [vmem:[#allocation2 + $0x20] sm:$0xff] 0.0
    %45 = vst.msk [vmem:[#allocation2 + $0x28] sm:$0xff] %vm40, 0.0
    %46 = vst [vmem:[#allocation2 + $0x30] sm:$0xff] 0.0
    %47 = vst.msk [vmem:[#allocation2 + $0x38] sm:$0xff] %vm40, 0.0
    %52 = vrot.lane.b32.xlu0 %v35, 2
    %v53 = vpop.permute.xlu0 %52
    %54 = vrot.lane.b32.xlu0 %v36, 2
    %v55 = vpop.permute.xlu0 %54
    %56 = vrot.lane.b32.xlu0 %v37, 2
    %v57 = vpop.permute.xlu0 %56
    %58 = vrot.lane.b32.xlu0 %v38, 2
    %v59 = vpop.permute.xlu0 %58
    %vm64 = vcmask 1047568
    %65 = vst.msk [vmem:[#allocation2] sm:$0xff] %vm64, %v53
    %vm66 = vcmask 15360
    %67 = vst.msk [vmem:[#allocation2 + $0x8] sm:$0xff] %vm66, %v53
    %68 = vst.msk [vmem:[#allocation2 + $0x10] sm:$0xff] %vm64, %v55
    %69 = vst.msk [vmem:[#allocation2 + $0x18] sm:$0xff] %vm66, %v55
    %70 = vst.msk [vmem:[#allocation2 + $0x20] sm:$0xff] %vm64, %v57
    %71 = vst.msk [vmem:[#allocation2 + $0x28] sm:$0xff] %vm66, %v57
    %72 = vst.msk [vmem:[#allocation2 + $0x30] sm:$0xff] %vm64, %v59
    %73 = vst.msk [vmem:[#allocation2 + $0x38] sm:$0xff] %vm66, %v59
    %v74 = vld [vmem:[%s2] sm:$0xff]
    %v75 = vld [vmem:[%s2 + $0x8] sm:$0xff]
    %v76 = vld [vmem:[%s2 + $0x10] sm:$0xff]
    %v77 = vld [vmem:[%s2 + $0x18] sm:$0xff]
    %v78 = vld [vmem:[#allocation2] sm:$0xff]
    %v79 = vld [vmem:[#allocation2 + $0x8] sm:$0xff]
    %v80 = vld [vmem:[#allocation2 + $0x10] sm:$0xff]
    %v81 = vld [vmem:[#allocation2 + $0x18] sm:$0xff]
    %v82 = vld [vmem:[#allocation2 + $0x20] sm:$0xff]
    %v83 = vld [vmem:[#allocation2 + $0x28] sm:$0xff]
    %v84 = vld [vmem:[#allocation2 + $0x30] sm:$0xff]
    %v85 = vld [vmem:[#allocation2 + $0x38] sm:$0xff]
    %vm86 = vcmask 261120
    %v88 = vsel %vm86, %v74, 0
    %v91 = vsel %vm86, %v75, 0
    %v94 = vsel %vm86, %v76, 0
    %v97 = vsel %vm86, %v77, 0
    %99 = vmatprep.subr.mxu0 %v79
    %100 = vmatpush1.msra.mxu0 %v78
    %101 = vmatprep.subr.mxu0 %v81
    %102 = vmatpush1.msra.mxu0 %v80
    %103 = vmatprep.subr.mxu0 %v83
    %104 = vmatpush1.msra.mxu0 %v82
    %105 = vmatprep.subr.mxu0 %v85
    %106 = vmatpush1.msra.mxu0 %v84
    %107 = vmatprep.subr.mxu0 0.0
    %108 = vmatpush1.msra.mxu0 0.0
    %109 = vmatprep.subr.mxu0 0.0
    %110 = vmatpush1.msra.mxu0 0.0
    %111 = vmatprep.subr.mxu0 0.0
    %112 = vmatpush1.msra.mxu0 0.0
    %113 = vmatprep.subr.mxu0 0.0
    %114 = vmatpush1.msra.mxu0 0.0
    %115 = vmatprep.subr.mxu0 0.0
    %116 = vmatpush1.msra.mxu0 0.0
    %117 = vmatprep.subr.mxu0 0.0
    %118 = vmatpush1.msra.mxu0 0.0
    %119 = vmatprep.subr.mxu0 0.0
    %120 = vmatpush1.msra.mxu0 0.0
    %121 = vmatprep.subr.mxu0 0.0
    %122 = vmatpush1.msra.mxu0 0.0
    %123 = vmatprep.subr.mxu0 0.0
    %124 = vmatpush1.msra.mxu0 0.0
    %125 = vmatprep.subr.mxu0 0.0
    %126 = vmatpush1.msra.mxu0 0.0
    %127 = vmatprep.subr.mxu0 0.0
    %128 = vmatpush1.msra.mxu0 0.0
    %129 = vmatprep.subr.mxu0 0.0
    %130 = vmatpush1.msra.mxu0 0.0
    %131 = vmatprep.subr.mxu0 0.0
    %132 = vmatpush1.msra.mxu0 0.0
    %133 = vmatprep.subr.mxu0 0.0
    %134 = vmatpush1.msra.mxu0 0.0
    %135 = vmatprep.subr.mxu0 0.0
    %136 = vmatpush1.msra.mxu0 0.0
    %137 = vmatprep.subr.mxu0 0.0
    %138 = vmatpush1.msra.mxu0 0.0
    %139 = vmatprep.subr.mxu0 0.0
    %140 = vmatpush1.msra.mxu0 0.0
    %141 = vmatprep.subr.mxu0 0.0
    %142 = vmatpush1.msra.mxu0 0.0
    %143 = vmatprep.subr.mxu0 0.0
    %144 = vmatpush1.msra.mxu0 0.0
    %145 = vmatprep.subr.mxu0 0.0
    %146 = vmatpush1.msra.mxu0 0.0
    %147 = vmatprep.subr.mxu0 0.0
    %148 = vmatpush1.msra.mxu0 0.0
    %149 = vmatprep.subr.mxu0 0.0
    %150 = vmatpush1.msra.mxu0 0.0
    %151 = vmatprep.subr.mxu0 0.0
    %152 = vmatpush1.msra.mxu0 0.0
    %153 = vmatprep.subr.mxu0 0.0
    %154 = vmatpush1.msra.mxu0 0.0
    %155 = vmatprep.subr.mxu0 0.0
    %156 = vmatpush1.msra.mxu0 0.0
    %157 = vmatprep.subr.mxu0 0.0
    %158 = vmatpush1.msra.mxu0 0.0
    %159 = vmatprep.subr.mxu0 0.0
    %160 = vmatpush1.msra.mxu0 0.0
    %161 = vmatprep.subr.mxu0 0.0
    %162 = vmatpush1.msra.mxu0 0.0
    %163 = vmatprep.mubr.f32.mxu0 0.0
    %164 = vmatmul.mubr.f32.gmra.mrb[0].mxu0 %v88
    %v165 = vpop.f32.mrb[0].mxu0
    %v166 = vadd.f32 0.0, %v165
    %v167 = vpop.f32.mrb[0].mxu0
    %v168 = vadd.f32 0.0, %v167
    %169 = vmatprep.mubr.f32.mxu0 0.0
    %170 = vmatmul.mubr.f32.gmra.mrb[0].mxu0 %v91
    %v171 = vpop.f32.mrb[0].mxu0
    %v172 = vadd.f32 0.0, %v171
    %v173 = vpop.f32.mrb[0].mxu0
    %v174 = vadd.f32 0.0, %v173
    %175 = vmatprep.mubr.f32.mxu0 0.0
    %176 = vmatmul.mubr.f32.gmra.mrb[0].mxu0 %v94
    %v177 = vpop.f32.mrb[0].mxu0
    %v178 = vadd.f32 0.0, %v177
    %v179 = vpop.f32.mrb[0].mxu0
    %v180 = vadd.f32 0.0, %v179
    %181 = vmatprep.mubr.f32.mxu0 0.0
    %182 = vmatmul.mubr.f32.gmra.mrb[0].mxu0 %v97
    %v183 = vpop.f32.mrb[0].mxu0
    %v184 = vadd.f32 0.0, %v183
    %v185 = vpop.f32.mrb[0].mxu0
    %v186 = vadd.f32 0.0, %v185
    %187 = vdwg.mxu0
    %v188 = vld [vmem:[%s1] sm:$0xff]
    %v189 = vld [vmem:[%s1 + $0x8] sm:$0xff]
    %v190 = vld [vmem:[%s1 + $0x10] sm:$0xff]
    %v191 = vld [vmem:[%s1 + $0x18] sm:$0xff]
    %193 = vset.pattern.permute.xlu0 0
    %194 = vperm.xlu0 %193, %v188
    %v195 = vpop.permute.xlu0 %194
    %198 = vset.pattern.permute.xlu0 0
    %199 = vperm.xlu0 %198, %v189
    %v200 = vpop.permute.xlu0 %199
    %203 = vset.pattern.permute.xlu0 0
    %204 = vperm.xlu0 %203, %v190
    %v205 = vpop.permute.xlu0 %204
    %208 = vset.pattern.permute.xlu0 0
    %209 = vperm.xlu0 %208, %v191
    %v210 = vpop.permute.xlu0 %209
    %v212 = vmul.f32 %v166, %v195
    %v213 = vmul.f32 %v172, %v200
    %v214 = vmul.f32 %v178, %v205
    %v215 = vmul.f32 %v184, %v210
    %s216 = scalar_lea.vmem %s1, 32
    %v217 = vld [vmem:[%s216] sm:$0xff]
    %v218 = vld [vmem:[%s216 + $0x8] sm:$0xff]
    %v219 = vld [vmem:[%s216 + $0x10] sm:$0xff]
    %v220 = vld [vmem:[%s216 + $0x18] sm:$0xff]
    %222 = vset.pattern.permute.xlu0 0
    %223 = vperm.xlu0 %222, %v217
    %v224 = vpop.permute.xlu0 %223
    %227 = vset.pattern.permute.xlu0 0
    %228 = vperm.xlu0 %227, %v218
    %v229 = vpop.permute.xlu0 %228
    %232 = vset.pattern.permute.xlu0 0
    %233 = vperm.xlu0 %232, %v219
    %v234 = vpop.permute.xlu0 %233
    %237 = vset.pattern.permute.xlu0 0
    %238 = vperm.xlu0 %237, %v220
    %v239 = vpop.permute.xlu0 %238
    %v241 = vmul.f32 %v166, %v224
    %v242 = vmul.f32 %v168, %v224
    %v243 = vmul.f32 %v172, %v229
    %v244 = vmul.f32 %v174, %v229
    %v245 = vmul.f32 %v178, %v234
    %v246 = vmul.f32 %v180, %v234
    %v247 = vmul.f32 %v184, %v239
    %v248 = vmul.f32 %v186, %v239
    %257 = vrot.lane.b32.xlu0 %v241, 127
    %v258 = vpop.permute.xlu0 %257
    %259 = vrot.lane.b32.xlu0 %v242, 127
    %v260 = vpop.permute.xlu0 %259
    %261 = vrot.lane.b32.xlu0 %v243, 127
    %v262 = vpop.permute.xlu0 %261
    %263 = vrot.lane.b32.xlu0 %v244, 127
    %v264 = vpop.permute.xlu0 %263
    %265 = vrot.lane.b32.xlu0 %v245, 127
    %v266 = vpop.permute.xlu0 %265
    %267 = vrot.lane.b32.xlu0 %v246, 127
    %v268 = vpop.permute.xlu0 %267
    %269 = vrot.lane.b32.xlu0 %v247, 127
    %v270 = vpop.permute.xlu0 %269
    %271 = vrot.lane.b32.xlu0 %v248, 127
    %v272 = vpop.permute.xlu0 %271
    %vm273 = vcmask 1039360
    %v274 = vsel %vm273, %v258, %v260
    %v275 = vsel %vm273, %v262, %v264
    %v276 = vsel %vm273, %v266, %v268
    %v277 = vsel %vm273, %v270, %v272
    %v282 = vadd.f32 %v212, %v274
    %v283 = vadd.f32 %v213, %v275
    %v284 = vadd.f32 %v214, %v276
    %v285 = vadd.f32 %v215, %v277
    %s286 = scalar_lea.vmem %s1, 64
    %v287 = vld [vmem:[%s286] sm:$0xff]
    %v288 = vld [vmem:[%s286 + $0x8] sm:$0xff]
    %v289 = vld [vmem:[%s286 + $0x10] sm:$0xff]
    %v290 = vld [vmem:[%s286 + $0x18] sm:$0xff]
    %292 = vset.pattern.permute.xlu0 0
    %293 = vperm.xlu0 %292, %v287
    %v294 = vpop.permute.xlu0 %293
    %297 = vset.pattern.permute.xlu0 0
    %298 = vperm.xlu0 %297, %v288
    %v299 = vpop.permute.xlu0 %298
    %302 = vset.pattern.permute.xlu0 0
    %303 = vperm.xlu0 %302, %v289
    %v304 = vpop.permute.xlu0 %303
    %307 = vset.pattern.permute.xlu0 0
    %308 = vperm.xlu0 %307, %v290
    %v309 = vpop.permute.xlu0 %308
    %v311 = vmul.f32 %v166, %v294
    %v312 = vmul.f32 %v168, %v294
    %v313 = vmul.f32 %v172, %v299
    %v314 = vmul.f32 %v174, %v299
    %v315 = vmul.f32 %v178, %v304
    %v316 = vmul.f32 %v180, %v304
    %v317 = vmul.f32 %v184, %v309
    %v318 = vmul.f32 %v186, %v309
    %327 = vrot.lane.b32.xlu0 %v311, 126
    %v328 = vpop.permute.xlu0 %327
    %329 = vrot.lane.b32.xlu0 %v312, 126
    %v330 = vpop.permute.xlu0 %329
    %331 = vrot.lane.b32.xlu0 %v313, 126
    %v332 = vpop.permute.xlu0 %331
    %333 = vrot.lane.b32.xlu0 %v314, 126
    %v334 = vpop.permute.xlu0 %333
    %335 = vrot.lane.b32.xlu0 %v315, 126
    %v336 = vpop.permute.xlu0 %335
    %337 = vrot.lane.b32.xlu0 %v316, 126
    %v338 = vpop.permute.xlu0 %337
    %339 = vrot.lane.b32.xlu0 %v317, 126
    %v340 = vpop.permute.xlu0 %339
    %341 = vrot.lane.b32.xlu0 %v318, 126
    %v342 = vpop.permute.xlu0 %341
    %vm343 = vcmask 1031168
    %v344 = vsel %vm343, %v328, %v330
    %v345 = vsel %vm343, %v332, %v334
    %v346 = vsel %vm343, %v336, %v338
    %v347 = vsel %vm343, %v340, %v342
    %v352 = vadd.f32 %v282, %v344
    %v353 = vadd.f32 %v283, %v345
    %v354 = vadd.f32 %v284, %v346
    %v355 = vadd.f32 %v285, %v347
    %s356 = scalar_lea.vmem %s1, 96
    %v357 = vld [vmem:[%s356] sm:$0xff]
    %v358 = vld [vmem:[%s356 + $0x8] sm:$0xff]
    %v359 = vld [vmem:[%s356 + $0x10] sm:$0xff]
    %v360 = vld [vmem:[%s356 + $0x18] sm:$0xff]
    %362 = vset.pattern.permute.xlu0 0
    %363 = vperm.xlu0 %362, %v357
    %v364 = vpop.permute.xlu0 %363
    %367 = vset.pattern.permute.xlu0 0
    %368 = vperm.xlu0 %367, %v358
    %v369 = vpop.permute.xlu0 %368
    %372 = vset.pattern.permute.xlu0 0
    %373 = vperm.xlu0 %372, %v359
    %v374 = vpop.permute.xlu0 %373
    %377 = vset.pattern.permute.xlu0 0
    %378 = vperm.xlu0 %377, %v360
    %v379 = vpop.permute.xlu0 %378
    %v381 = vmul.f32 %v166, %v364
    %v382 = vmul.f32 %v168, %v364
    %v383 = vmul.f32 %v172, %v369
    %v384 = vmul.f32 %v174, %v369
    %v385 = vmul.f32 %v178, %v374
    %v386 = vmul.f32 %v180, %v374
    %v387 = vmul.f32 %v184, %v379
    %v388 = vmul.f32 %v186, %v379
    %397 = vrot.lane.b32.xlu0 %v381, 125
    %v398 = vpop.permute.xlu0 %397
    %399 = vrot.lane.b32.xlu0 %v382, 125
    %v400 = vpop.permute.xlu0 %399
    %401 = vrot.lane.b32.xlu0 %v383, 125
    %v402 = vpop.permute.xlu0 %401
    %403 = vrot.lane.b32.xlu0 %v384, 125
    %v404 = vpop.permute.xlu0 %403
    %405 = vrot.lane.b32.xlu0 %v385, 125
    %v406 = vpop.permute.xlu0 %405
    %407 = vrot.lane.b32.xlu0 %v386, 125
    %v408 = vpop.permute.xlu0 %407
    %409 = vrot.lane.b32.xlu0 %v387, 125
    %v410 = vpop.permute.xlu0 %409
    %411 = vrot.lane.b32.xlu0 %v388, 125
    %v412 = vpop.permute.xlu0 %411
    %vm413 = vcmask 1022976
    %v414 = vsel %vm413, %v398, %v400
    %v415 = vsel %vm413, %v402, %v404
    %v416 = vsel %vm413, %v406, %v408
    %v417 = vsel %vm413, %v410, %v412
    %v422 = vadd.f32 %v352, %v414
    %v423 = vadd.f32 %v353, %v415
    %v424 = vadd.f32 %v354, %v416
    %v425 = vadd.f32 %v355, %v417
    %s426 = scalar_lea.vmem %s1, 128
    %v427 = vld [vmem:[%s426] sm:$0xff]
    %v428 = vld [vmem:[%s426 + $0x8] sm:$0xff]
    %v429 = vld [vmem:[%s426 + $0x10] sm:$0xff]
    %v430 = vld [vmem:[%s426 + $0x18] sm:$0xff]
    %432 = vset.pattern.permute.xlu0 0
    %433 = vperm.xlu0 %432, %v427
    %v434 = vpop.permute.xlu0 %433
    %437 = vset.pattern.permute.xlu0 0
    %438 = vperm.xlu0 %437, %v428
    %v439 = vpop.permute.xlu0 %438
    %442 = vset.pattern.permute.xlu0 0
    %443 = vperm.xlu0 %442, %v429
    %v444 = vpop.permute.xlu0 %443
    %447 = vset.pattern.permute.xlu0 0
    %448 = vperm.xlu0 %447, %v430
    %v449 = vpop.permute.xlu0 %448
    %v451 = vmul.f32 %v166, %v434
    %v452 = vmul.f32 %v168, %v434
    %v453 = vmul.f32 %v172, %v439
    %v454 = vmul.f32 %v174, %v439
    %v455 = vmul.f32 %v178, %v444
    %v456 = vmul.f32 %v180, %v444
    %v457 = vmul.f32 %v184, %v449
    %v458 = vmul.f32 %v186, %v449
    %467 = vrot.lane.b32.xlu0 %v451, 124
    %v468 = vpop.permute.xlu0 %467
    %469 = vrot.lane.b32.xlu0 %v452, 124
    %v470 = vpop.permute.xlu0 %469
    %471 = vrot.lane.b32.xlu0 %v453, 124
    %v472 = vpop.permute.xlu0 %471
    %473 = vrot.lane.b32.xlu0 %v454, 124
    %v474 = vpop.permute.xlu0 %473
    %475 = vrot.lane.b32.xlu0 %v455, 124
    %v476 = vpop.permute.xlu0 %475
    %477 = vrot.lane.b32.xlu0 %v456, 124
    %v478 = vpop.permute.xlu0 %477
    %479 = vrot.lane.b32.xlu0 %v457, 124
    %v480 = vpop.permute.xlu0 %479
    %481 = vrot.lane.b32.xlu0 %v458, 124
    %v482 = vpop.permute.xlu0 %481
    %vm483 = vcmask 1014784
    %v484 = vsel %vm483, %v468, %v470
    %v485 = vsel %vm483, %v472, %v474
    %v486 = vsel %vm483, %v476, %v478
    %v487 = vsel %vm483, %v480, %v482
    %v492 = vadd.f32 %v422, %v484
    %v493 = vadd.f32 %v423, %v485
    %v494 = vadd.f32 %v424, %v486
    %v495 = vadd.f32 %v425, %v487
    %v496 = vld [vmem:[%s3] sm:$0xff]
    %v497 = vld [vmem:[%s3 + $0x8] sm:$0xff]
    %v498 = vld [vmem:[%s3 + $0x10] sm:$0xff]
    %v499 = vld [vmem:[%s3 + $0x18] sm:$0xff]
    %501 = vset.pattern.permute.xlu0 0
    %502 = vperm.xlu0 %501, %v496
    %v503 = vpop.permute.xlu0 %502
    %506 = vset.pattern.permute.xlu0 0
    %507 = vperm.xlu0 %506, %v497
    %v508 = vpop.permute.xlu0 %507
    %511 = vset.pattern.permute.xlu0 0
    %512 = vperm.xlu0 %511, %v498
    %v513 = vpop.permute.xlu0 %512
    %516 = vset.pattern.permute.xlu0 0
    %517 = vperm.xlu0 %516, %v499
    %v518 = vpop.permute.xlu0 %517
    %v520 = vadd.f32 %v492, %v503
    %v521 = vadd.f32 %v493, %v508
    %v522 = vadd.f32 %v494, %v513
    %v523 = vadd.f32 %v495, %v518
    %v524 = vmax.f32 %v520, 0.0
    %v525 = vmax.f32 %v521, 0.0
    %v526 = vmax.f32 %v522, 0.0
    %v527 = vmax.f32 %v523, 0.0
    %v528 = vld [vmem:[%s4] sm:$0xff]
    %v529 = vld [vmem:[%s4 + $0x8] sm:$0xff]
    %v530 = vld [vmem:[%s4 + $0x10] sm:$0xff]
    %v531 = vld [vmem:[%s4 + $0x18] sm:$0xff]
    %v532 = vld [vmem:[%s4 + $0x20] sm:$0xff]
    %v533 = vld [vmem:[%s4 + $0x28] sm:$0xff]
    %v534 = vld [vmem:[%s4 + $0x30] sm:$0xff]
    %v535 = vld [vmem:[%s4 + $0x38] sm:$0xff]
    %v536 = vld [vmem:[%s4 + $0x40] sm:$0xff]
    %v537 = vld [vmem:[%s4 + $0x48] sm:$0xff]
    %v538 = vld [vmem:[%s4 + $0x50] sm:$0xff]
    %v539 = vld [vmem:[%s4 + $0x58] sm:$0xff]
    %v540 = vld [vmem:[%s4 + $0x60] sm:$0xff]
    %v541 = vld [vmem:[%s4 + $0x68] sm:$0xff]
    %v542 = vld [vmem:[%s4 + $0x70] sm:$0xff]
    %v543 = vld [vmem:[%s4 + $0x78] sm:$0xff]
    %544 = vmatprep.subr.mxu0 0.0
    %545 = vmatpush1.msra.mxu0 %v528
    %546 = vmatprep.subr.mxu0 0.0
    %547 = vmatpush1.msra.mxu0 %v529
    %548 = vmatprep.subr.mxu0 0.0
    %549 = vmatpush1.msra.mxu0 %v530
    %550 = vmatprep.subr.mxu0 0.0
    %551 = vmatpush1.msra.mxu0 %v531
    %552 = vmatprep.subr.mxu0 0.0
    %553 = vmatpush1.msra.mxu0 %v532
    %554 = vmatprep.subr.mxu0 0.0
    %555 = vmatpush1.msra.mxu0 %v533
    %556 = vmatprep.subr.mxu0 0.0
    %557 = vmatpush1.msra.mxu0 %v534
    %558 = vmatprep.subr.mxu0 0.0
    %559 = vmatpush1.msra.mxu0 %v535
    %560 = vmatprep.subr.mxu0 0.0
    %561 = vmatpush1.msra.mxu0 %v536
    %562 = vmatprep.subr.mxu0 0.0
    %563 = vmatpush1.msra.mxu0 %v537
    %564 = vmatprep.subr.mxu0 0.0
    %565 = vmatpush1.msra.mxu0 %v538
    %566 = vmatprep.subr.mxu0 0.0
    %567 = vmatpush1.msra.mxu0 %v539
    %568 = vmatprep.subr.mxu0 0.0
    %569 = vmatpush1.msra.mxu0 %v540
    %570 = vmatprep.subr.mxu0 0.0
    %571 = vmatpush1.msra.mxu0 %v541
    %572 = vmatprep.subr.mxu0 0.0
    %573 = vmatpush1.msra.mxu0 %v542
    %574 = vmatprep.subr.mxu0 0.0
    %575 = vmatpush1.msra.mxu0 %v543
    %576 = vmatprep.subr.mxu0 0.0
    %577 = vmatpush1.msra.mxu0 0.0
    %578 = vmatprep.subr.mxu0 0.0
    %579 = vmatpush1.msra.mxu0 0.0
    %580 = vmatprep.subr.mxu0 0.0
    %581 = vmatpush1.msra.mxu0 0.0
    %582 = vmatprep.subr.mxu0 0.0
    %583 = vmatpush1.msra.mxu0 0.0
    %584 = vmatprep.subr.mxu0 0.0
    %585 = vmatpush1.msra.mxu0 0.0
    %586 = vmatprep.subr.mxu0 0.0
    %587 = vmatpush1.msra.mxu0 0.0
    %588 = vmatprep.subr.mxu0 0.0
    %589 = vmatpush1.msra.mxu0 0.0
    %590 = vmatprep.subr.mxu0 0.0
    %591 = vmatpush1.msra.mxu0 0.0
    %592 = vmatprep.subr.mxu0 0.0
    %593 = vmatpush1.msra.mxu0 0.0
    %594 = vmatprep.subr.mxu0 0.0
    %595 = vmatpush1.msra.mxu0 0.0
    %596 = vmatprep.subr.mxu0 0.0
    %597 = vmatpush1.msra.mxu0 0.0
    %598 = vmatprep.subr.mxu0 0.0
    %599 = vmatpush1.msra.mxu0 0.0
    %600 = vmatprep.subr.mxu0 0.0
    %601 = vmatpush1.msra.mxu0 0.0
    %602 = vmatprep.subr.mxu0 0.0
    %603 = vmatpush1.msra.mxu0 0.0
    %604 = vmatprep.subr.mxu0 0.0
    %605 = vmatpush1.msra.mxu0 0.0
    %606 = vmatprep.subr.mxu0 0.0
    %607 = vmatpush1.msra.mxu0 0.0
    %608 = vmatprep.mubr.f32.mxu0 0.0
    %609 = vmatmul.mubr.f32.gmra.mrb[0].mxu0 %v524
    %v610 = vpop.f32.mrb[0].mxu0
    %v611 = vadd.f32 0.0, %v610
    %v612 = vpop.f32.mrb[0].mxu0
    %613 = vmatprep.mubr.f32.mxu0 0.0
    %614 = vmatmul.mubr.f32.gmra.mrb[0].mxu0 %v525
    %v615 = vpop.f32.mrb[0].mxu0
    %v616 = vadd.f32 0.0, %v615
    %v617 = vpop.f32.mrb[0].mxu0
    %618 = vmatprep.mubr.f32.mxu0 0.0
    %619 = vmatmul.mubr.f32.gmra.mrb[0].mxu0 %v526
    %v620 = vpop.f32.mrb[0].mxu0
    %v621 = vadd.f32 0.0, %v620
    %v622 = vpop.f32.mrb[0].mxu0
    %623 = vmatprep.mubr.f32.mxu0 0.0
    %624 = vmatmul.mubr.f32.gmra.mrb[0].mxu0 %v527
    %v625 = vpop.f32.mrb[0].mxu0
    %v626 = vadd.f32 0.0, %v625
    %v627 = vpop.f32.mrb[0].mxu0
    %628 = vdwg.mxu0
    %629 = vst.msk [vmem:[#allocation3] sm:$0xff] %vm86, %v611
    %630 = vst.msk [vmem:[#allocation3 + $0x8] sm:$0xff] %vm86, %v616
    %631 = vst.msk [vmem:[#allocation3 + $0x10] sm:$0xff] %vm86, %v621
    %632 = vst.msk [vmem:[#allocation3 + $0x18] sm:$0xff] %vm86, %v626
    %v633 = vld [vmem:[%s6] sm:$0xff]
    %v634 = vld [vmem:[%s6 + $0x8] sm:$0xff]
    %v635 = vld [vmem:[%s6 + $0x10] sm:$0xff]
    %v636 = vld [vmem:[%s6 + $0x18] sm:$0xff]
    %v637 = vld [vmem:[%s6 + $0x20] sm:$0xff]
    %v638 = vld [vmem:[%s6 + $0x28] sm:$0xff]
    %v639 = vld [vmem:[%s6 + $0x30] sm:$0xff]
    %v640 = vld [vmem:[%s6 + $0x38] sm:$0xff]
    %v641 = vld [vmem:[%s5] sm:$0xff]
    %v642 = vld [vmem:[%s5 + $0x8] sm:$0xff]
    %v643 = vld [vmem:[%s5 + $0x10] sm:$0xff]
    %v644 = vld [vmem:[%s5 + $0x18] sm:$0xff]
    %v645 = vld [vmem:[%s5 + $0x20] sm:$0xff]
    %v646 = vld [vmem:[%s5 + $0x28] sm:$0xff]
    %v647 = vld [vmem:[%s5 + $0x30] sm:$0xff]
    %v648 = vld [vmem:[%s5 + $0x38] sm:$0xff]
    %v650 = vsel %vm86, %v641, 0
    %v653 = vsel %vm86, %v642, 0
    %v656 = vsel %vm86, %v643, 0
    %v659 = vsel %vm86, %v644, 0
    %v662 = vsel %vm86, %v645, 0
    %v665 = vsel %vm86, %v646, 0
    %v668 = vsel %vm86, %v647, 0
    %v671 = vsel %vm86, %v648, 0
    %673 = vmatprep.subr.mxu0 0.0
    %674 = vmatpush1.msra.mxu0 %v611
    %675 = vmatprep.subr.mxu0 0.0
    %676 = vmatpush1.msra.mxu0 %v616
    %677 = vmatprep.subr.mxu0 0.0
    %678 = vmatpush1.msra.mxu0 %v621
    %679 = vmatprep.subr.mxu0 0.0
    %680 = vmatpush1.msra.mxu0 %v626
    %681 = vmatprep.subr.mxu0 0.0
    %682 = vmatpush1.msra.mxu0 0.0
    %683 = vmatprep.subr.mxu0 0.0
    %684 = vmatpush1.msra.mxu0 0.0
    %685 = vmatprep.subr.mxu0 0.0
    %686 = vmatpush1.msra.mxu0 0.0
    %687 = vmatprep.subr.mxu0 0.0
    %688 = vmatpush1.msra.mxu0 0.0
    %689 = vmatprep.subr.mxu0 0.0
    %690 = vmatpush1.msra.mxu0 0.0
    %691 = vmatprep.subr.mxu0 0.0
    %692 = vmatpush1.msra.mxu0 0.0
    %693 = vmatprep.subr.mxu0 0.0
    %694 = vmatpush1.msra.mxu0 0.0
    %695 = vmatprep.subr.mxu0 0.0
    %696 = vmatpush1.msra.mxu0 0.0
    %697 = vmatprep.subr.mxu0 0.0
    %698 = vmatpush1.msra.mxu0 0.0
    %699 = vmatprep.subr.mxu0 0.0
    %700 = vmatpush1.msra.mxu0 0.0
    %701 = vmatprep.subr.mxu0 0.0
    %702 = vmatpush1.msra.mxu0 0.0
    %703 = vmatprep.subr.mxu0 0.0
    %704 = vmatpush1.msra.mxu0 0.0
    %705 = vmatprep.subr.mxu0 0.0
    %706 = vmatpush1.msra.mxu0 0.0
    %707 = vmatprep.subr.mxu0 0.0
    %708 = vmatpush1.msra.mxu0 0.0
    %709 = vmatprep.subr.mxu0 0.0
    %710 = vmatpush1.msra.mxu0 0.0
    %711 = vmatprep.subr.mxu0 0.0
    %712 = vmatpush1.msra.mxu0 0.0
    %713 = vmatprep.subr.mxu0 0.0
    %714 = vmatpush1.msra.mxu0 0.0
    %715 = vmatprep.subr.mxu0 0.0
    %716 = vmatpush1.msra.mxu0 0.0
    %717 = vmatprep.subr.mxu0 0.0
    %718 = vmatpush1.msra.mxu0 0.0
    %719 = vmatprep.subr.mxu0 0.0
    %720 = vmatpush1.msra.mxu0 0.0
    %721 = vmatprep.subr.mxu0 0.0
    %722 = vmatpush1.msra.mxu0 0.0
    %723 = vmatprep.subr.mxu0 0.0
    %724 = vmatpush1.msra.mxu0 0.0
    %725 = vmatprep.subr.mxu0 0.0
    %726 = vmatpush1.msra.mxu0 0.0
    %727 = vmatprep.subr.mxu0 0.0
    %728 = vmatpush1.msra.mxu0 0.0
    %729 = vmatprep.subr.mxu0 0.0
    %730 = vmatpush1.msra.mxu0 0.0
    %731 = vmatprep.subr.mxu0 0.0
    %732 = vmatpush1.msra.mxu0 0.0
    %733 = vmatprep.subr.mxu0 0.0
    %734 = vmatpush1.msra.mxu0 0.0
    %735 = vmatprep.subr.mxu0 0.0
    %736 = vmatpush1.msra.mxu0 0.0
    %737 = vmatprep.mubr.f32.mxu0 0.0
    %738 = vmatmul.mubr.f32.gmra.mrb[0].mxu0 %v650
    %v739 = vpop.f32.mrb[0].mxu0
    %v740 = vadd.f32 0.0, %v739
    %v741 = vpop.f32.mrb[0].mxu0
    %742 = vmatprep.mubr.f32.mxu0 0.0
    %743 = vmatmul.mubr.f32.gmra.mrb[0].mxu0 %v653
    %v744 = vpop.f32.mrb[0].mxu0
    %v745 = vadd.f32 0.0, %v744
    %v746 = vpop.f32.mrb[0].mxu0
    %747 = vmatprep.mubr.f32.mxu0 0.0
    %748 = vmatmul.mubr.f32.gmra.mrb[0].mxu0 %v656
    %v749 = vpop.f32.mrb[0].mxu0
    %v750 = vadd.f32 0.0, %v749
    %v751 = vpop.f32.mrb[0].mxu0
    %752 = vmatprep.mubr.f32.mxu0 0.0
    %753 = vmatmul.mubr.f32.gmra.mrb[0].mxu0 %v659
    %v754 = vpop.f32.mrb[0].mxu0
    %v755 = vadd.f32 0.0, %v754
    %v756 = vpop.f32.mrb[0].mxu0
    %757 = vmatprep.mubr.f32.mxu0 0.0
    %758 = vmatmul.mubr.f32.gmra.mrb[0].mxu0 %v662
    %v759 = vpop.f32.mrb[0].mxu0
    %v760 = vadd.f32 0.0, %v759
    %v761 = vpop.f32.mrb[0].mxu0
    %762 = vmatprep.mubr.f32.mxu0 0.0
    %763 = vmatmul.mubr.f32.gmra.mrb[0].mxu0 %v665
    %v764 = vpop.f32.mrb[0].mxu0
    %v765 = vadd.f32 0.0, %v764
    %v766 = vpop.f32.mrb[0].mxu0
    %767 = vmatprep.mubr.f32.mxu0 0.0
    %768 = vmatmul.mubr.f32.gmra.mrb[0].mxu0 %v668
    %v769 = vpop.f32.mrb[0].mxu0
    %v770 = vadd.f32 0.0, %v769
    %v771 = vpop.f32.mrb[0].mxu0
    %772 = vmatprep.mubr.f32.mxu0 0.0
    %773 = vmatmul.mubr.f32.gmra.mrb[0].mxu0 %v671
    %v774 = vpop.f32.mrb[0].mxu0
    %v775 = vadd.f32 0.0, %v774
    %v776 = vpop.f32.mrb[0].mxu0
    %777 = vdwg.mxu0
    %779 = vset.pattern.permute.xlu0 0
    %780 = vperm.xlu0 %779, %v633
    %v781 = vpop.permute.xlu0 %780
    %784 = vset.pattern.permute.xlu0 0
    %785 = vperm.xlu0 %784, %v634
    %v786 = vpop.permute.xlu0 %785
    %789 = vset.pattern.permute.xlu0 0
    %790 = vperm.xlu0 %789, %v635
    %v791 = vpop.permute.xlu0 %790
    %794 = vset.pattern.permute.xlu0 0
    %795 = vperm.xlu0 %794, %v636
    %v796 = vpop.permute.xlu0 %795
    %799 = vset.pattern.permute.xlu0 0
    %800 = vperm.xlu0 %799, %v637
    %v801 = vpop.permute.xlu0 %800
    %804 = vset.pattern.permute.xlu0 0
    %805 = vperm.xlu0 %804, %v638
    %v806 = vpop.permute.xlu0 %805
    %809 = vset.pattern.permute.xlu0 0
    %810 = vperm.xlu0 %809, %v639
    %v811 = vpop.permute.xlu0 %810
    %814 = vset.pattern.permute.xlu0 0
    %815 = vperm.xlu0 %814, %v640
    %v816 = vpop.permute.xlu0 %815
    %v818 = vadd.f32 %v781, %v740
    %v819 = vadd.f32 %v786, %v745
    %v820 = vadd.f32 %v791, %v750
    %v821 = vadd.f32 %v796, %v755
    %v822 = vadd.f32 %v801, %v760
    %v823 = vadd.f32 %v806, %v765
    %v824 = vadd.f32 %v811, %v770
    %v825 = vadd.f32 %v816, %v775
    %s826 = scalar_lea.vmem %s5, 64
    %v827 = vld [vmem:[%s826] sm:$0xff]
    %v828 = vld [vmem:[%s826 + $0x8] sm:$0xff]
    %v829 = vld [vmem:[%s826 + $0x10] sm:$0xff]
    %v830 = vld [vmem:[%s826 + $0x18] sm:$0xff]
    %v831 = vld [vmem:[%s826 + $0x20] sm:$0xff]
    %v832 = vld [vmem:[%s826 + $0x28] sm:$0xff]
    %v833 = vld [vmem:[%s826 + $0x30] sm:$0xff]
    %v834 = vld [vmem:[%s826 + $0x38] sm:$0xff]
    %839 = vrot.lane.b32.xlu0 %v611, 127
    %v840 = vpop.permute.xlu0 %839
    %841 = vrot.lane.b32.xlu0 %v616, 127
    %v842 = vpop.permute.xlu0 %841
    %843 = vrot.lane.b32.xlu0 %v621, 127
    %v844 = vpop.permute.xlu0 %843
    %845 = vrot.lane.b32.xlu0 %v626, 127
    %v846 = vpop.permute.xlu0 %845
    %v852 = vsel %vm86, %v827, 0
    %v855 = vsel %vm86, %v828, 0
    %v858 = vsel %vm86, %v829, 0
    %v861 = vsel %vm86, %v830, 0
    %v864 = vsel %vm86, %v831, 0
    %v867 = vsel %vm86, %v832, 0
    %v870 = vsel %vm86, %v833, 0
    %v873 = vsel %vm86, %v834, 0
    %875 = vmatprep.subr.mxu0 0.0
    %876 = vmatpush1.msra.mxu0 %v840
    %877 = vmatprep.subr.mxu0 0.0
    %878 = vmatpush1.msra.mxu0 %v842
    %879 = vmatprep.subr.mxu0 0.0
    %880 = vmatpush1.msra.mxu0 %v844
    %881 = vmatprep.subr.mxu0 0.0
    %882 = vmatpush1.msra.mxu0 %v846
    %883 = vmatprep.subr.mxu0 0.0
    %884 = vmatpush1.msra.mxu0 0.0
    %885 = vmatprep.subr.mxu0 0.0
    %886 = vmatpush1.msra.mxu0 0.0
    %887 = vmatprep.subr.mxu0 0.0
    %888 = vmatpush1.msra.mxu0 0.0
    %889 = vmatprep.subr.mxu0 0.0
    %890 = vmatpush1.msra.mxu0 0.0
    %891 = vmatprep.subr.mxu0 0.0
    %892 = vmatpush1.msra.mxu0 0.0
    %893 = vmatprep.subr.mxu0 0.0
    %894 = vmatpush1.msra.mxu0 0.0
    %895 = vmatprep.subr.mxu0 0.0
    %896 = vmatpush1.msra.mxu0 0.0
    %897 = vmatprep.subr.mxu0 0.0
    %898 = vmatpush1.msra.mxu0 0.0
    %899 = vmatprep.subr.mxu0 0.0
    %900 = vmatpush1.msra.mxu0 0.0
    %901 = vmatprep.subr.mxu0 0.0
    %902 = vmatpush1.msra.mxu0 0.0
    %903 = vmatprep.subr.mxu0 0.0
    %904 = vmatpush1.msra.mxu0 0.0
    %905 = vmatprep.subr.mxu0 0.0
    %906 = vmatpush1.msra.mxu0 0.0
    %907 = vmatprep.subr.mxu0 0.0
    %908 = vmatpush1.msra.mxu0 0.0
    %909 = vmatprep.subr.mxu0 0.0
    %910 = vmatpush1.msra.mxu0 0.0
    %911 = vmatprep.subr.mxu0 0.0
    %912 = vmatpush1.msra.mxu0 0.0
    %913 = vmatprep.subr.mxu0 0.0
    %914 = vmatpush1.msra.mxu0 0.0
    %915 = vmatprep.subr.mxu0 0.0
    %916 = vmatpush1.msra.mxu0 0.0
    %917 = vmatprep.subr.mxu0 0.0
    %918 = vmatpush1.msra.mxu0 0.0
    %919 = vmatprep.subr.mxu0 0.0
    %920 = vmatpush1.msra.mxu0 0.0
    %921 = vmatprep.subr.mxu0 0.0
    %922 = vmatpush1.msra.mxu0 0.0
    %923 = vmatprep.subr.mxu0 0.0
    %924 = vmatpush1.msra.mxu0 0.0
    %925 = vmatprep.subr.mxu0 0.0
    %926 = vmatpush1.msra.mxu0 0.0
    %927 = vmatprep.subr.mxu0 0.0
    %928 = vmatpush1.msra.mxu0 0.0
    %929 = vmatprep.subr.mxu0 0.0
    %930 = vmatpush1.msra.mxu0 0.0
    %931 = vmatprep.subr.mxu0 0.0
    %932 = vmatpush1.msra.mxu0 0.0
    %933 = vmatprep.subr.mxu0 0.0
    %934 = vmatpush1.msra.mxu0 0.0
    %935 = vmatprep.subr.mxu0 0.0
    %936 = vmatpush1.msra.mxu0 0.0
    %937 = vmatprep.subr.mxu0 0.0
    %938 = vmatpush1.msra.mxu0 0.0
    %939 = vmatprep.mubr.f32.mxu0 0.0
    %940 = vmatmul.mubr.f32.gmra.mrb[0].mxu0 %v852
    %v941 = vpop.f32.mrb[0].mxu0
    %v942 = vadd.f32 0.0, %v941
    %v943 = vpop.f32.mrb[0].mxu0
    %944 = vmatprep.mubr.f32.mxu0 0.0
    %945 = vmatmul.mubr.f32.gmra.mrb[0].mxu0 %v855
    %v946 = vpop.f32.mrb[0].mxu0
    %v947 = vadd.f32 0.0, %v946
    %v948 = vpop.f32.mrb[0].mxu0
    %949 = vmatprep.mubr.f32.mxu0 0.0
    %950 = vmatmul.mubr.f32.gmra.mrb[0].mxu0 %v858
    %v951 = vpop.f32.mrb[0].mxu0
    %v952 = vadd.f32 0.0, %v951
    %v953 = vpop.f32.mrb[0].mxu0
    %954 = vmatprep.mubr.f32.mxu0 0.0
    %955 = vmatmul.mubr.f32.gmra.mrb[0].mxu0 %v861
    %v956 = vpop.f32.mrb[0].mxu0
    %v957 = vadd.f32 0.0, %v956
    %v958 = vpop.f32.mrb[0].mxu0
    %959 = vmatprep.mubr.f32.mxu0 0.0
    %960 = vmatmul.mubr.f32.gmra.mrb[0].mxu0 %v864
    %v961 = vpop.f32.mrb[0].mxu0
    %v962 = vadd.f32 0.0, %v961
    %v963 = vpop.f32.mrb[0].mxu0
    %964 = vmatprep.mubr.f32.mxu0 0.0
    %965 = vmatmul.mubr.f32.gmra.mrb[0].mxu0 %v867
    %v966 = vpop.f32.mrb[0].mxu0
    %v967 = vadd.f32 0.0, %v966
    %v968 = vpop.f32.mrb[0].mxu0
    %969 = vmatprep.mubr.f32.mxu0 0.0
    %970 = vmatmul.mubr.f32.gmra.mrb[0].mxu0 %v870
    %v971 = vpop.f32.mrb[0].mxu0
    %v972 = vadd.f32 0.0, %v971
    %v973 = vpop.f32.mrb[0].mxu0
    %974 = vmatprep.mubr.f32.mxu0 0.0
    %975 = vmatmul.mubr.f32.gmra.mrb[0].mxu0 %v873
    %v976 = vpop.f32.mrb[0].mxu0
    %v977 = vadd.f32 0.0, %v976
    %v978 = vpop.f32.mrb[0].mxu0
    %979 = vdwg.mxu0
    %v980 = vadd.f32 %v818, %v942
    %v981 = vadd.f32 %v819, %v947
    %v982 = vadd.f32 %v820, %v952
    %v983 = vadd.f32 %v821, %v957
    %v984 = vadd.f32 %v822, %v962
    %v985 = vadd.f32 %v823, %v967
    %v986 = vadd.f32 %v824, %v972
    %v987 = vadd.f32 %v825, %v977
    %s988 = scalar_lea.vmem %s5, 128
    %v989 = vld [vmem:[%s988] sm:$0xff]
    %v990 = vld [vmem:[%s988 + $0x8] sm:$0xff]
    %v991 = vld [vmem:[%s988 + $0x10] sm:$0xff]
    %v992 = vld [vmem:[%s988 + $0x18] sm:$0xff]
    %v993 = vld [vmem:[%s988 + $0x20] sm:$0xff]
    %v994 = vld [vmem:[%s988 + $0x28] sm:$0xff]
    %v995 = vld [vmem:[%s988 + $0x30] sm:$0xff]
    %v996 = vld [vmem:[%s988 + $0x38] sm:$0xff]
    %997 = vrot.lane.b32.xlu0 %v611, 126
    %v998 = vpop.permute.xlu0 %997
    %999 = vrot.lane.b32.xlu0 %v616, 126
    %v1000 = vpop.permute.xlu0 %999
    %1001 = vrot.lane.b32.xlu0 %v621, 126
    %v1002 = vpop.permute.xlu0 %1001
    %1003 = vrot.lane.b32.xlu0 %v626, 126
    %v1004 = vpop.permute.xlu0 %1003
    %v1010 = vsel %vm86, %v989, 0
    %v1013 = vsel %vm86, %v990, 0
    %v1016 = vsel %vm86, %v991, 0
    %v1019 = vsel %vm86, %v992, 0
    %v1022 = vsel %vm86, %v993, 0
    %v1025 = vsel %vm86, %v994, 0
    %v1028 = vsel %vm86, %v995, 0
    %v1031 = vsel %vm86, %v996, 0
    %1033 = vmatprep.subr.mxu0 0.0
    %1034 = vmatpush1.msra.mxu0 %v998
    %1035 = vmatprep.subr.mxu0 0.0
    %1036 = vmatpush1.msra.mxu0 %v1000
    %1037 = vmatprep.subr.mxu0 0.0
    %1038 = vmatpush1.msra.mxu0 %v1002
    %1039 = vmatprep.subr.mxu0 0.0
    %1040 = vmatpush1.msra.mxu0 %v1004
    %1041 = vmatprep.subr.mxu0 0.0
    %1042 = vmatpush1.msra.mxu0 0.0
    %1043 = vmatprep.subr.mxu0 0.0
    %1044 = vmatpush1.msra.mxu0 0.0
    %1045 = vmatprep.subr.mxu0 0.0
    %1046 = vmatpush1.msra.mxu0 0.0
    %1047 = vmatprep.subr.mxu0 0.0
    %1048 = vmatpush1.msra.mxu0 0.0
    %1049 = vmatprep.subr.mxu0 0.0
    %1050 = vmatpush1.msra.mxu0 0.0
    %1051 = vmatprep.subr.mxu0 0.0
    %1052 = vmatpush1.msra.mxu0 0.0
    %1053 = vmatprep.subr.mxu0 0.0
    %1054 = vmatpush1.msra.mxu0 0.0
    %1055 = vmatprep.subr.mxu0 0.0
    %1056 = vmatpush1.msra.mxu0 0.0
    %1057 = vmatprep.subr.mxu0 0.0
    %1058 = vmatpush1.msra.mxu0 0.0
    %1059 = vmatprep.subr.mxu0 0.0
    %1060 = vmatpush1.msra.mxu0 0.0
    %1061 = vmatprep.subr.mxu0 0.0
    %1062 = vmatpush1.msra.mxu0 0.0
    %1063 = vmatprep.subr.mxu0 0.0
    %1064 = vmatpush1.msra.mxu0 0.0
    %1065 = vmatprep.subr.mxu0 0.0
    %1066 = vmatpush1.msra.mxu0 0.0
    %1067 = vmatprep.subr.mxu0 0.0
    %1068 = vmatpush1.msra.mxu0 0.0
    %1069 = vmatprep.subr.mxu0 0.0
    %1070 = vmatpush1.msra.mxu0 0.0
    %1071 = vmatprep.subr.mxu0 0.0
    %1072 = vmatpush1.msra.mxu0 0.0
    %1073 = vmatprep.subr.mxu0 0.0
    %1074 = vmatpush1.msra.mxu0 0.0
    %1075 = vmatprep.subr.mxu0 0.0
    %1076 = vmatpush1.msra.mxu0 0.0
    %1077 = vmatprep.subr.mxu0 0.0
    %1078 = vmatpush1.msra.mxu0 0.0
    %1079 = vmatprep.subr.mxu0 0.0
    %1080 = vmatpush1.msra.mxu0 0.0
    %1081 = vmatprep.subr.mxu0 0.0
    %1082 = vmatpush1.msra.mxu0 0.0
    %1083 = vmatprep.subr.mxu0 0.0
    %1084 = vmatpush1.msra.mxu0 0.0
    %1085 = vmatprep.subr.mxu0 0.0
    %1086 = vmatpush1.msra.mxu0 0.0
    %1087 = vmatprep.subr.mxu0 0.0
    %1088 = vmatpush1.msra.mxu0 0.0
    %1089 = vmatprep.subr.mxu0 0.0
    %1090 = vmatpush1.msra.mxu0 0.0
    %1091 = vmatprep.subr.mxu0 0.0
    %1092 = vmatpush1.msra.mxu0 0.0
    %1093 = vmatprep.subr.mxu0 0.0
    %1094 = vmatpush1.msra.mxu0 0.0
    %1095 = vmatprep.subr.mxu0 0.0
    %1096 = vmatpush1.msra.mxu0 0.0
    %1097 = vmatprep.mubr.f32.mxu0 0.0
    %1098 = vmatmul.mubr.f32.gmra.mrb[0].mxu0 %v1010
    %v1099 = vpop.f32.mrb[0].mxu0
    %v1100 = vadd.f32 0.0, %v1099
    %v1101 = vpop.f32.mrb[0].mxu0
    %1102 = vmatprep.mubr.f32.mxu0 0.0
    %1103 = vmatmul.mubr.f32.gmra.mrb[0].mxu0 %v1013
    %v1104 = vpop.f32.mrb[0].mxu0
    %v1105 = vadd.f32 0.0, %v1104
    %v1106 = vpop.f32.mrb[0].mxu0
    %1107 = vmatprep.mubr.f32.mxu0 0.0
    %1108 = vmatmul.mubr.f32.gmra.mrb[0].mxu0 %v1016
    %v1109 = vpop.f32.mrb[0].mxu0
    %v1110 = vadd.f32 0.0, %v1109
    %v1111 = vpop.f32.mrb[0].mxu0
    %1112 = vmatprep.mubr.f32.mxu0 0.0
    %1113 = vmatmul.mubr.f32.gmra.mrb[0].mxu0 %v1019
    %v1114 = vpop.f32.mrb[0].mxu0
    %v1115 = vadd.f32 0.0, %v1114
    %v1116 = vpop.f32.mrb[0].mxu0
    %1117 = vmatprep.mubr.f32.mxu0 0.0
    %1118 = vmatmul.mubr.f32.gmra.mrb[0].mxu0 %v1022
    %v1119 = vpop.f32.mrb[0].mxu0
    %v1120 = vadd.f32 0.0, %v1119
    %v1121 = vpop.f32.mrb[0].mxu0
    %1122 = vmatprep.mubr.f32.mxu0 0.0
    %1123 = vmatmul.mubr.f32.gmra.mrb[0].mxu0 %v1025
    %v1124 = vpop.f32.mrb[0].mxu0
    %v1125 = vadd.f32 0.0, %v1124
    %v1126 = vpop.f32.mrb[0].mxu0
    %1127 = vmatprep.mubr.f32.mxu0 0.0
    %1128 = vmatmul.mubr.f32.gmra.mrb[0].mxu0 %v1028
    %v1129 = vpop.f32.mrb[0].mxu0
    %v1130 = vadd.f32 0.0, %v1129
    %v1131 = vpop.f32.mrb[0].mxu0
    %1132 = vmatprep.mubr.f32.mxu0 0.0
    %1133 = vmatmul.mubr.f32.gmra.mrb[0].mxu0 %v1031
    %v1134 = vpop.f32.mrb[0].mxu0
    %v1135 = vadd.f32 0.0, %v1134
    %v1136 = vpop.f32.mrb[0].mxu0
    %1137 = vdwg.mxu0
    %v1138 = vadd.f32 %v980, %v1100
    %v1139 = vadd.f32 %v981, %v1105
    %v1140 = vadd.f32 %v982, %v1110
    %v1141 = vadd.f32 %v983, %v1115
    %v1142 = vadd.f32 %v984, %v1120
    %v1143 = vadd.f32 %v985, %v1125
    %v1144 = vadd.f32 %v986, %v1130
    %v1145 = vadd.f32 %v987, %v1135
    %v1146 = vmax.f32 %v1138, 0.0
    %v1147 = vmax.f32 %v1139, 0.0
    %v1148 = vmax.f32 %v1140, 0.0
    %v1149 = vmax.f32 %v1141, 0.0
    %v1150 = vmax.f32 %v1142, 0.0
    %v1151 = vmax.f32 %v1143, 0.0
    %v1152 = vmax.f32 %v1144, 0.0
    %v1153 = vmax.f32 %v1145, 0.0
    %v1154 = vld [vmem:[%s8] sm:$0xff]
    %v1155 = vld [vmem:[%s8 + $0x8] sm:$0xff]
    %v1156 = vld [vmem:[%s8 + $0x10] sm:$0xff]
    %v1157 = vld [vmem:[%s8 + $0x18] sm:$0xff]
    %v1158 = vld [vmem:[%s8 + $0x20] sm:$0xff]
    %v1159 = vld [vmem:[%s8 + $0x28] sm:$0xff]
    %v1160 = vld [vmem:[%s8 + $0x30] sm:$0xff]
    %v1161 = vld [vmem:[%s8 + $0x38] sm:$0xff]
    %v1162 = vld [vmem:[%s8 + $0x40] sm:$0xff]
    %v1163 = vld [vmem:[%s8 + $0x48] sm:$0xff]
    %v1164 = vld [vmem:[%s8 + $0x50] sm:$0xff]
    %v1165 = vld [vmem:[%s8 + $0x58] sm:$0xff]
    %v1166 = vld [vmem:[%s8 + $0x60] sm:$0xff]
    %v1167 = vld [vmem:[%s8 + $0x68] sm:$0xff]
    %v1168 = vld [vmem:[%s8 + $0x70] sm:$0xff]
    %v1169 = vld [vmem:[%s8 + $0x78] sm:$0xff]
    %v1170 = vld [vmem:[%s7] sm:$0xff]
    %v1171 = vld [vmem:[%s7 + $0x8] sm:$0xff]
    %v1172 = vld [vmem:[%s7 + $0x10] sm:$0xff]
    %v1173 = vld [vmem:[%s7 + $0x18] sm:$0xff]
    %v1174 = vld [vmem:[%s7 + $0x20] sm:$0xff]
    %v1175 = vld [vmem:[%s7 + $0x28] sm:$0xff]
    %v1176 = vld [vmem:[%s7 + $0x30] sm:$0xff]
    %v1177 = vld [vmem:[%s7 + $0x38] sm:$0xff]
    %v1178 = vld [vmem:[%s7 + $0x40] sm:$0xff]
    %v1179 = vld [vmem:[%s7 + $0x48] sm:$0xff]
    %v1180 = vld [vmem:[%s7 + $0x50] sm:$0xff]
    %v1181 = vld [vmem:[%s7 + $0x58] sm:$0xff]
    %v1182 = vld [vmem:[%s7 + $0x60] sm:$0xff]
    %v1183 = vld [vmem:[%s7 + $0x68] sm:$0xff]
    %v1184 = vld [vmem:[%s7 + $0x70] sm:$0xff]
    %v1185 = vld [vmem:[%s7 + $0x78] sm:$0xff]
    %vm1186 = vcmask 523264
    %v1188 = vsel %vm1186, %v1170, 0
    %v1191 = vsel %vm1186, %v1171, 0
    %v1194 = vsel %vm1186, %v1172, 0
    %v1197 = vsel %vm1186, %v1173, 0
    %v1200 = vsel %vm1186, %v1174, 0
    %v1203 = vsel %vm1186, %v1175, 0
    %v1206 = vsel %vm1186, %v1176, 0
    %v1209 = vsel %vm1186, %v1177, 0
    %v1212 = vsel %vm1186, %v1178, 0
    %v1215 = vsel %vm1186, %v1179, 0
    %v1218 = vsel %vm1186, %v1180, 0
    %v1221 = vsel %vm1186, %v1181, 0
    %v1224 = vsel %vm1186, %v1182, 0
    %v1227 = vsel %vm1186, %v1183, 0
    %v1230 = vsel %vm1186, %v1184, 0
    %v1233 = vsel %vm1186, %v1185, 0
    %1235 = vmatprep.subr.mxu0 0.0
    %1236 = vmatpush1.msra.mxu0 %v1146
    %1237 = vmatprep.subr.mxu0 0.0
    %1238 = vmatpush1.msra.mxu0 %v1147
    %1239 = vmatprep.subr.mxu0 0.0
    %1240 = vmatpush1.msra.mxu0 %v1148
    %1241 = vmatprep.subr.mxu0 0.0
    %1242 = vmatpush1.msra.mxu0 %v1149
    %1243 = vmatprep.subr.mxu0 0.0
    %1244 = vmatpush1.msra.mxu0 %v1150
    %1245 = vmatprep.subr.mxu0 0.0
    %1246 = vmatpush1.msra.mxu0 %v1151
    %1247 = vmatprep.subr.mxu0 0.0
    %1248 = vmatpush1.msra.mxu0 %v1152
    %1249 = vmatprep.subr.mxu0 0.0
    %1250 = vmatpush1.msra.mxu0 %v1153
    %1251 = vmatprep.subr.mxu0 0.0
    %1252 = vmatpush1.msra.mxu0 0.0
    %1253 = vmatprep.subr.mxu0 0.0
    %1254 = vmatpush1.msra.mxu0 0.0
    %1255 = vmatprep.subr.mxu0 0.0
    %1256 = vmatpush1.msra.mxu0 0.0
    %1257 = vmatprep.subr.mxu0 0.0
    %1258 = vmatpush1.msra.mxu0 0.0
    %1259 = vmatprep.subr.mxu0 0.0
    %1260 = vmatpush1.msra.mxu0 0.0
    %1261 = vmatprep.subr.mxu0 0.0
    %1262 = vmatpush1.msra.mxu0 0.0
    %1263 = vmatprep.subr.mxu0 0.0
    %1264 = vmatpush1.msra.mxu0 0.0
    %1265 = vmatprep.subr.mxu0 0.0
    %1266 = vmatpush1.msra.mxu0 0.0
    %1267 = vmatprep.subr.mxu0 0.0
    %1268 = vmatpush1.msra.mxu0 0.0
    %1269 = vmatprep.subr.mxu0 0.0
    %1270 = vmatpush1.msra.mxu0 0.0
    %1271 = vmatprep.subr.mxu0 0.0
    %1272 = vmatpush1.msra.mxu0 0.0
    %1273 = vmatprep.subr.mxu0 0.0
    %1274 = vmatpush1.msra.mxu0 0.0
    %1275 = vmatprep.subr.mxu0 0.0
    %1276 = vmatpush1.msra.mxu0 0.0
    %1277 = vmatprep.subr.mxu0 0.0
    %1278 = vmatpush1.msra.mxu0 0.0
    %1279 = vmatprep.subr.mxu0 0.0
    %1280 = vmatpush1.msra.mxu0 0.0
    %1281 = vmatprep.subr.mxu0 0.0
    %1282 = vmatpush1.msra.mxu0 0.0
    %1283 = vmatprep.subr.mxu0 0.0
    %1284 = vmatpush1.msra.mxu0 0.0
    %1285 = vmatprep.subr.mxu0 0.0
    %1286 = vmatpush1.msra.mxu0 0.0
    %1287 = vmatprep.subr.mxu0 0.0
    %1288 = vmatpush1.msra.mxu0 0.0
    %1289 = vmatprep.subr.mxu0 0.0
    %1290 = vmatpush1.msra.mxu0 0.0
    %1291 = vmatprep.subr.mxu0 0.0
    %1292 = vmatpush1.msra.mxu0 0.0
    %1293 = vmatprep.subr.mxu0 0.0
    %1294 = vmatpush1.msra.mxu0 0.0
    %1295 = vmatprep.subr.mxu0 0.0
    %1296 = vmatpush1.msra.mxu0 0.0
    %1297 = vmatprep.subr.mxu0 0.0
    %1298 = vmatpush1.msra.mxu0 0.0
    %1299 = vmatprep.mubr.f32.mxu0 0.0
    %1300 = vmatmul.mubr.f32.gmra.mrb[0].mxu0 %v1188
    %v1301 = vpop.f32.mrb[0].mxu0
    %v1302 = vadd.f32 0.0, %v1301
    %v1303 = vpop.f32.mrb[0].mxu0
    %1304 = vmatprep.mubr.f32.mxu0 0.0
    %1305 = vmatmul.mubr.f32.gmra.mrb[0].mxu0 %v1191
    %v1306 = vpop.f32.mrb[0].mxu0
    %v1307 = vadd.f32 0.0, %v1306
    %v1308 = vpop.f32.mrb[0].mxu0
    %1309 = vmatprep.mubr.f32.mxu0 0.0
    %1310 = vmatmul.mubr.f32.gmra.mrb[0].mxu0 %v1194
    %v1311 = vpop.f32.mrb[0].mxu0
    %v1312 = vadd.f32 0.0, %v1311
    %v1313 = vpop.f32.mrb[0].mxu0
    %1314 = vmatprep.mubr.f32.mxu0 0.0
    %1315 = vmatmul.mubr.f32.gmra.mrb[0].mxu0 %v1197
    %v1316 = vpop.f32.mrb[0].mxu0
    %v1317 = vadd.f32 0.0, %v1316
    %v1318 = vpop.f32.mrb[0].mxu0
    %1319 = vmatprep.mubr.f32.mxu0 0.0
    %1320 = vmatmul.mubr.f32.gmra.mrb[0].mxu0 %v1200
    %v1321 = vpop.f32.mrb[0].mxu0
    %v1322 = vadd.f32 0.0, %v1321
    %v1323 = vpop.f32.mrb[0].mxu0
    %1324 = vmatprep.mubr.f32.mxu0 0.0
    %1325 = vmatmul.mubr.f32.gmra.mrb[0].mxu0 %v1203
    %v1326 = vpop.f32.mrb[0].mxu0
    %v1327 = vadd.f32 0.0, %v1326
    %v1328 = vpop.f32.mrb[0].mxu0
    %1329 = vmatprep.mubr.f32.mxu0 0.0
    %1330 = vmatmul.mubr.f32.gmra.mrb[0].mxu0 %v1206
    %v1331 = vpop.f32.mrb[0].mxu0
    %v1332 = vadd.f32 0.0, %v1331
    %v1333 = vpop.f32.mrb[0].mxu0
    %1334 = vmatprep.mubr.f32.mxu0 0.0
    %1335 = vmatmul.mubr.f32.gmra.mrb[0].mxu0 %v1209
    %v1336 = vpop.f32.mrb[0].mxu0
    %v1337 = vadd.f32 0.0, %v1336
    %v1338 = vpop.f32.mrb[0].mxu0
    %1339 = vmatprep.mubr.f32.mxu0 0.0
    %1340 = vmatmul.mubr.f32.gmra.mrb[0].mxu0 %v1212
    %v1341 = vpop.f32.mrb[0].mxu0
    %v1342 = vadd.f32 0.0, %v1341
    %v1343 = vpop.f32.mrb[0].mxu0
    %1344 = vmatprep.mubr.f32.mxu0 0.0
    %1345 = vmatmul.mubr.f32.gmra.mrb[0].mxu0 %v1215
    %v1346 = vpop.f32.mrb[0].mxu0
    %v1347 = vadd.f32 0.0, %v1346
    %v1348 = vpop.f32.mrb[0].mxu0
    %1349 = vmatprep.mubr.f32.mxu0 0.0
    %1350 = vmatmul.mubr.f32.gmra.mrb[0].mxu0 %v1218
    %v1351 = vpop.f32.mrb[0].mxu0
    %v1352 = vadd.f32 0.0, %v1351
    %v1353 = vpop.f32.mrb[0].mxu0
    %1354 = vmatprep.mubr.f32.mxu0 0.0
    %1355 = vmatmul.mubr.f32.gmra.mrb[0].mxu0 %v1221
    %v1356 = vpop.f32.mrb[0].mxu0
    %v1357 = vadd.f32 0.0, %v1356
    %v1358 = vpop.f32.mrb[0].mxu0
    %1359 = vmatprep.mubr.f32.mxu0 0.0
    %1360 = vmatmul.mubr.f32.gmra.mrb[0].mxu0 %v1224
    %v1361 = vpop.f32.mrb[0].mxu0
    %v1362 = vadd.f32 0.0, %v1361
    %v1363 = vpop.f32.mrb[0].mxu0
    %1364 = vmatprep.mubr.f32.mxu0 0.0
    %1365 = vmatmul.mubr.f32.gmra.mrb[0].mxu0 %v1227
    %v1366 = vpop.f32.mrb[0].mxu0
    %v1367 = vadd.f32 0.0, %v1366
    %v1368 = vpop.f32.mrb[0].mxu0
    %1369 = vmatprep.mubr.f32.mxu0 0.0
    %1370 = vmatmul.mubr.f32.gmra.mrb[0].mxu0 %v1230
    %v1371 = vpop.f32.mrb[0].mxu0
    %v1372 = vadd.f32 0.0, %v1371
    %v1373 = vpop.f32.mrb[0].mxu0
    %1374 = vmatprep.mubr.f32.mxu0 0.0
    %1375 = vmatmul.mubr.f32.gmra.mrb[0].mxu0 %v1233
    %v1376 = vpop.f32.mrb[0].mxu0
    %v1377 = vadd.f32 0.0, %v1376
    %v1378 = vpop.f32.mrb[0].mxu0
    %1379 = vdwg.mxu0
    %1381 = vset.pattern.permute.xlu0 0
    %1382 = vperm.xlu0 %1381, %v1154
    %v1383 = vpop.permute.xlu0 %1382
    %1386 = vset.pattern.permute.xlu0 0
    %1387 = vperm.xlu0 %1386, %v1155
    %v1388 = vpop.permute.xlu0 %1387
    %1391 = vset.pattern.permute.xlu0 0
    %1392 = vperm.xlu0 %1391, %v1156
    %v1393 = vpop.permute.xlu0 %1392
    %1396 = vset.pattern.permute.xlu0 0
    %1397 = vperm.xlu0 %1396, %v1157
    %v1398 = vpop.permute.xlu0 %1397
    %1401 = vset.pattern.permute.xlu0 0
    %1402 = vperm.xlu0 %1401, %v1158
    %v1403 = vpop.permute.xlu0 %1402
    %1406 = vset.pattern.permute.xlu0 0
    %1407 = vperm.xlu0 %1406, %v1159
    %v1408 = vpop.permute.xlu0 %1407
    %1411 = vset.pattern.permute.xlu0 0
    %1412 = vperm.xlu0 %1411, %v1160
    %v1413 = vpop.permute.xlu0 %1412
    %1416 = vset.pattern.permute.xlu0 0
    %1417 = vperm.xlu0 %1416, %v1161
    %v1418 = vpop.permute.xlu0 %1417
    %1421 = vset.pattern.permute.xlu0 0
    %1422 = vperm.xlu0 %1421, %v1162
    %v1423 = vpop.permute.xlu0 %1422
    %1426 = vset.pattern.permute.xlu0 0
    %1427 = vperm.xlu0 %1426, %v1163
    %v1428 = vpop.permute.xlu0 %1427
    %1431 = vset.pattern.permute.xlu0 0
    %1432 = vperm.xlu0 %1431, %v1164
    %v1433 = vpop.permute.xlu0 %1432
    %1436 = vset.pattern.permute.xlu0 0
    %1437 = vperm.xlu0 %1436, %v1165
    %v1438 = vpop.permute.xlu0 %1437
    %1441 = vset.pattern.permute.xlu0 0
    %1442 = vperm.xlu0 %1441, %v1166
    %v1443 = vpop.permute.xlu0 %1442
    %1446 = vset.pattern.permute.xlu0 0
    %1447 = vperm.xlu0 %1446, %v1167
    %v1448 = vpop.permute.xlu0 %1447
    %1451 = vset.pattern.permute.xlu0 0
    %1452 = vperm.xlu0 %1451, %v1168
    %v1453 = vpop.permute.xlu0 %1452
    %1456 = vset.pattern.permute.xlu0 0
    %1457 = vperm.xlu0 %1456, %v1169
    %v1458 = vpop.permute.xlu0 %1457
    %v1460 = vadd.f32 %v1383, %v1302
    %v1461 = vadd.f32 %v1388, %v1307
    %v1462 = vadd.f32 %v1393, %v1312
    %v1463 = vadd.f32 %v1398, %v1317
    %v1464 = vadd.f32 %v1403, %v1322
    %v1465 = vadd.f32 %v1408, %v1327
    %v1466 = vadd.f32 %v1413, %v1332
    %v1467 = vadd.f32 %v1418, %v1337
    %v1468 = vadd.f32 %v1423, %v1342
    %v1469 = vadd.f32 %v1428, %v1347
    %v1470 = vadd.f32 %v1433, %v1352
    %v1471 = vadd.f32 %v1438, %v1357
    %v1472 = vadd.f32 %v1443, %v1362
    %v1473 = vadd.f32 %v1448, %v1367
    %v1474 = vadd.f32 %v1453, %v1372
    %v1475 = vadd.f32 %v1458, %v1377
    %s1476 = scalar_lea.vmem %s7, 128
    %v1477 = vld [vmem:[%s1476] sm:$0xff]
    %v1478 = vld [vmem:[%s1476 + $0x8] sm:$0xff]
    %v1479 = vld [vmem:[%s1476 + $0x10] sm:$0xff]
    %v1480 = vld [vmem:[%s1476 + $0x18] sm:$0xff]
    %v1481 = vld [vmem:[%s1476 + $0x20] sm:$0xff]
    %v1482 = vld [vmem:[%s1476 + $0x28] sm:$0xff]
    %v1483 = vld [vmem:[%s1476 + $0x30] sm:$0xff]
    %v1484 = vld [vmem:[%s1476 + $0x38] sm:$0xff]
    %v1485 = vld [vmem:[%s1476 + $0x40] sm:$0xff]
    %v1486 = vld [vmem:[%s1476 + $0x48] sm:$0xff]
    %v1487 = vld [vmem:[%s1476 + $0x50] sm:$0xff]
    %v1488 = vld [vmem:[%s1476 + $0x58] sm:$0xff]
    %v1489 = vld [vmem:[%s1476 + $0x60] sm:$0xff]
    %v1490 = vld [vmem:[%s1476 + $0x68] sm:$0xff]
    %v1491 = vld [vmem:[%s1476 + $0x70] sm:$0xff]
    %v1492 = vld [vmem:[%s1476 + $0x78] sm:$0xff]
    %1501 = vrot.lane.b32.xlu0 %v1146, 127
    %v1502 = vpop.permute.xlu0 %1501
    %1503 = vrot.lane.b32.xlu0 %v1147, 127
    %v1504 = vpop.permute.xlu0 %1503
    %1505 = vrot.lane.b32.xlu0 %v1148, 127
    %v1506 = vpop.permute.xlu0 %1505
    %1507 = vrot.lane.b32.xlu0 %v1149, 127
    %v1508 = vpop.permute.xlu0 %1507
    %1509 = vrot.lane.b32.xlu0 %v1150, 127
    %v1510 = vpop.permute.xlu0 %1509
    %1511 = vrot.lane.b32.xlu0 %v1151, 127
    %v1512 = vpop.permute.xlu0 %1511
    %1513 = vrot.lane.b32.xlu0 %v1152, 127
    %v1514 = vpop.permute.xlu0 %1513
    %1515 = vrot.lane.b32.xlu0 %v1153, 127
    %v1516 = vpop.permute.xlu0 %1515
    %v1526 = vsel %vm1186, %v1477, 0
    %v1529 = vsel %vm1186, %v1478, 0
    %v1532 = vsel %vm1186, %v1479, 0
    %v1535 = vsel %vm1186, %v1480, 0
    %v1538 = vsel %vm1186, %v1481, 0
    %v1541 = vsel %vm1186, %v1482, 0
    %v1544 = vsel %vm1186, %v1483, 0
    %v1547 = vsel %vm1186, %v1484, 0
    %v1550 = vsel %vm1186, %v1485, 0
    %v1553 = vsel %vm1186, %v1486, 0
    %v1556 = vsel %vm1186, %v1487, 0
    %v1559 = vsel %vm1186, %v1488, 0
    %v1562 = vsel %vm1186, %v1489, 0
    %v1565 = vsel %vm1186, %v1490, 0
    %v1568 = vsel %vm1186, %v1491, 0
    %v1571 = vsel %vm1186, %v1492, 0
    %1573 = vmatprep.subr.mxu0 0.0
    %1574 = vmatpush1.msra.mxu0 %v1502
    %1575 = vmatprep.subr.mxu0 0.0
    %1576 = vmatpush1.msra.mxu0 %v1504
    %1577 = vmatprep.subr.mxu0 0.0
    %1578 = vmatpush1.msra.mxu0 %v1506
    %1579 = vmatprep.subr.mxu0 0.0
    %1580 = vmatpush1.msra.mxu0 %v1508
    %1581 = vmatprep.subr.mxu0 0.0
    %1582 = vmatpush1.msra.mxu0 %v1510
    %1583 = vmatprep.subr.mxu0 0.0
    %1584 = vmatpush1.msra.mxu0 %v1512
    %1585 = vmatprep.subr.mxu0 0.0
    %1586 = vmatpush1.msra.mxu0 %v1514
    %1587 = vmatprep.subr.mxu0 0.0
    %1588 = vmatpush1.msra.mxu0 %v1516
    %1589 = vmatprep.subr.mxu0 0.0
    %1590 = vmatpush1.msra.mxu0 0.0
    %1591 = vmatprep.subr.mxu0 0.0
    %1592 = vmatpush1.msra.mxu0 0.0
    %1593 = vmatprep.subr.mxu0 0.0
    %1594 = vmatpush1.msra.mxu0 0.0
    %1595 = vmatprep.subr.mxu0 0.0
    %1596 = vmatpush1.msra.mxu0 0.0
    %1597 = vmatprep.subr.mxu0 0.0
    %1598 = vmatpush1.msra.mxu0 0.0
    %1599 = vmatprep.subr.mxu0 0.0
    %1600 = vmatpush1.msra.mxu0 0.0
    %1601 = vmatprep.subr.mxu0 0.0
    %1602 = vmatpush1.msra.mxu0 0.0
    %1603 = vmatprep.subr.mxu0 0.0
    %1604 = vmatpush1.msra.mxu0 0.0
    %1605 = vmatprep.subr.mxu0 0.0
    %1606 = vmatpush1.msra.mxu0 0.0
    %1607 = vmatprep.subr.mxu0 0.0
    %1608 = vmatpush1.msra.mxu0 0.0
    %1609 = vmatprep.subr.mxu0 0.0
    %1610 = vmatpush1.msra.mxu0 0.0
    %1611 = vmatprep.subr.mxu0 0.0
    %1612 = vmatpush1.msra.mxu0 0.0
    %1613 = vmatprep.subr.mxu0 0.0
    %1614 = vmatpush1.msra.mxu0 0.0
    %1615 = vmatprep.subr.mxu0 0.0
    %1616 = vmatpush1.msra.mxu0 0.0
    %1617 = vmatprep.subr.mxu0 0.0
    %1618 = vmatpush1.msra.mxu0 0.0
    %1619 = vmatprep.subr.mxu0 0.0
    %1620 = vmatpush1.msra.mxu0 0.0
    %1621 = vmatprep.subr.mxu0 0.0
    %1622 = vmatpush1.msra.mxu0 0.0
    %1623 = vmatprep.subr.mxu0 0.0
    %1624 = vmatpush1.msra.mxu0 0.0
    %1625 = vmatprep.subr.mxu0 0.0
    %1626 = vmatpush1.msra.mxu0 0.0
    %1627 = vmatprep.subr.mxu0 0.0
    %1628 = vmatpush1.msra.mxu0 0.0
    %1629 = vmatprep.subr.mxu0 0.0
    %1630 = vmatpush1.msra.mxu0 0.0
    %1631 = vmatprep.subr.mxu0 0.0
    %1632 = vmatpush1.msra.mxu0 0.0
    %1633 = vmatprep.subr.mxu0 0.0
    %1634 = vmatpush1.msra.mxu0 0.0
    %1635 = vmatprep.subr.mxu0 0.0
    %1636 = vmatpush1.msra.mxu0 0.0
    %1637 = vmatprep.mubr.f32.mxu0 0.0
    %1638 = vmatmul.mubr.f32.gmra.mrb[0].mxu0 %v1526
    %v1639 = vpop.f32.mrb[0].mxu0
    %v1640 = vadd.f32 0.0, %v1639
    %v1641 = vpop.f32.mrb[0].mxu0
    %1642 = vmatprep.mubr.f32.mxu0 0.0
    %1643 = vmatmul.mubr.f32.gmra.mrb[0].mxu0 %v1529
    %v1644 = vpop.f32.mrb[0].mxu0
    %v1645 = vadd.f32 0.0, %v1644
    %v1646 = vpop.f32.mrb[0].mxu0
    %1647 = vmatprep.mubr.f32.mxu0 0.0
    %1648 = vmatmul.mubr.f32.gmra.mrb[0].mxu0 %v1532
    %v1649 = vpop.f32.mrb[0].mxu0
    %v1650 = vadd.f32 0.0, %v1649
    %v1651 = vpop.f32.mrb[0].mxu0
    %1652 = vmatprep.mubr.f32.mxu0 0.0
    %1653 = vmatmul.mubr.f32.gmra.mrb[0].mxu0 %v1535
    %v1654 = vpop.f32.mrb[0].mxu0
    %v1655 = vadd.f32 0.0, %v1654
    %v1656 = vpop.f32.mrb[0].mxu0
    %1657 = vmatprep.mubr.f32.mxu0 0.0
    %1658 = vmatmul.mubr.f32.gmra.mrb[0].mxu0 %v1538
    %v1659 = vpop.f32.mrb[0].mxu0
    %v1660 = vadd.f32 0.0, %v1659
    %v1661 = vpop.f32.mrb[0].mxu0
    %1662 = vmatprep.mubr.f32.mxu0 0.0
    %1663 = vmatmul.mubr.f32.gmra.mrb[0].mxu0 %v1541
    %v1664 = vpop.f32.mrb[0].mxu0
    %v1665 = vadd.f32 0.0, %v1664
    %v1666 = vpop.f32.mrb[0].mxu0
    %1667 = vmatprep.mubr.f32.mxu0 0.0
    %1668 = vmatmul.mubr.f32.gmra.mrb[0].mxu0 %v1544
    %v1669 = vpop.f32.mrb[0].mxu0
    %v1670 = vadd.f32 0.0, %v1669
    %v1671 = vpop.f32.mrb[0].mxu0
    %1672 = vmatprep.mubr.f32.mxu0 0.0
    %1673 = vmatmul.mubr.f32.gmra.mrb[0].mxu0 %v1547
    %v1674 = vpop.f32.mrb[0].mxu0
    %v1675 = vadd.f32 0.0, %v1674
    %v1676 = vpop.f32.mrb[0].mxu0
    %1677 = vmatprep.mubr.f32.mxu0 0.0
    %1678 = vmatmul.mubr.f32.gmra.mrb[0].mxu0 %v1550
    %v1679 = vpop.f32.mrb[0].mxu0
    %v1680 = vadd.f32 0.0, %v1679
    %v1681 = vpop.f32.mrb[0].mxu0
    %1682 = vmatprep.mubr.f32.mxu0 0.0
    %1683 = vmatmul.mubr.f32.gmra.mrb[0].mxu0 %v1553
    %v1684 = vpop.f32.mrb[0].mxu0
    %v1685 = vadd.f32 0.0, %v1684
    %v1686 = vpop.f32.mrb[0].mxu0
    %1687 = vmatprep.mubr.f32.mxu0 0.0
    %1688 = vmatmul.mubr.f32.gmra.mrb[0].mxu0 %v1556
    %v1689 = vpop.f32.mrb[0].mxu0
    %v1690 = vadd.f32 0.0, %v1689
    %v1691 = vpop.f32.mrb[0].mxu0
    %1692 = vmatprep.mubr.f32.mxu0 0.0
    %1693 = vmatmul.mubr.f32.gmra.mrb[0].mxu0 %v1559
    %v1694 = vpop.f32.mrb[0].mxu0
    %v1695 = vadd.f32 0.0, %v1694
    %v1696 = vpop.f32.mrb[0].mxu0
    %1697 = vmatprep.mubr.f32.mxu0 0.0
    %1698 = vmatmul.mubr.f32.gmra.mrb[0].mxu0 %v1562
    %v1699 = vpop.f32.mrb[0].mxu0
    %v1700 = vadd.f32 0.0, %v1699
    %v1701 = vpop.f32.mrb[0].mxu0
    %1702 = vmatprep.mubr.f32.mxu0 0.0
    %1703 = vmatmul.mubr.f32.gmra.mrb[0].mxu0 %v1565
    %v1704 = vpop.f32.mrb[0].mxu0
    %v1705 = vadd.f32 0.0, %v1704
    %v1706 = vpop.f32.mrb[0].mxu0
    %1707 = vmatprep.mubr.f32.mxu0 0.0
    %1708 = vmatmul.mubr.f32.gmra.mrb[0].mxu0 %v1568
    %v1709 = vpop.f32.mrb[0].mxu0
    %v1710 = vadd.f32 0.0, %v1709
    %v1711 = vpop.f32.mrb[0].mxu0
    %1712 = vmatprep.mubr.f32.mxu0 0.0
    %1713 = vmatmul.mubr.f32.gmra.mrb[0].mxu0 %v1571
    %v1714 = vpop.f32.mrb[0].mxu0
    %v1715 = vadd.f32 0.0, %v1714
    %v1716 = vpop.f32.mrb[0].mxu0
    %1717 = vdwg.mxu0
    %v1718 = vadd.f32 %v1460, %v1640
    %v1719 = vadd.f32 %v1461, %v1645
    %v1720 = vadd.f32 %v1462, %v1650
    %v1721 = vadd.f32 %v1463, %v1655
    %v1722 = vadd.f32 %v1464, %v1660
    %v1723 = vadd.f32 %v1465, %v1665
    %v1724 = vadd.f32 %v1466, %v1670
    %v1725 = vadd.f32 %v1467, %v1675
    %v1726 = vadd.f32 %v1468, %v1680
    %v1727 = vadd.f32 %v1469, %v1685
    %v1728 = vadd.f32 %v1470, %v1690
    %v1729 = vadd.f32 %v1471, %v1695
    %v1730 = vadd.f32 %v1472, %v1700
    %v1731 = vadd.f32 %v1473, %v1705
    %v1732 = vadd.f32 %v1474, %v1710
    %v1733 = vadd.f32 %v1475, %v1715
    %s1734 = scalar_lea.vmem %s7, 256
    %v1735 = vld [vmem:[%s1734] sm:$0xff]
    %v1736 = vld [vmem:[%s1734 + $0x8] sm:$0xff]
    %v1737 = vld [vmem:[%s1734 + $0x10] sm:$0xff]
    %v1738 = vld [vmem:[%s1734 + $0x18] sm:$0xff]
    %v1739 = vld [vmem:[%s1734 + $0x20] sm:$0xff]
    %v1740 = vld [vmem:[%s1734 + $0x28] sm:$0xff]
    %v1741 = vld [vmem:[%s1734 + $0x30] sm:$0xff]
    %v1742 = vld [vmem:[%s1734 + $0x38] sm:$0xff]
    %v1743 = vld [vmem:[%s1734 + $0x40] sm:$0xff]
    %v1744 = vld [vmem:[%s1734 + $0x48] sm:$0xff]
    %v1745 = vld [vmem:[%s1734 + $0x50] sm:$0xff]
    %v1746 = vld [vmem:[%s1734 + $0x58] sm:$0xff]
    %v1747 = vld [vmem:[%s1734 + $0x60] sm:$0xff]
    %v1748 = vld [vmem:[%s1734 + $0x68] sm:$0xff]
    %v1749 = vld [vmem:[%s1734 + $0x70] sm:$0xff]
    %v1750 = vld [vmem:[%s1734 + $0x78] sm:$0xff]
    %1751 = vrot.lane.b32.xlu0 %v1146, 126
    %v1752 = vpop.permute.xlu0 %1751
    %1753 = vrot.lane.b32.xlu0 %v1147, 126
    %v1754 = vpop.permute.xlu0 %1753
    %1755 = vrot.lane.b32.xlu0 %v1148, 126
    %v1756 = vpop.permute.xlu0 %1755
    %1757 = vrot.lane.b32.xlu0 %v1149, 126
    %v1758 = vpop.permute.xlu0 %1757
    %1759 = vrot.lane.b32.xlu0 %v1150, 126
    %v1760 = vpop.permute.xlu0 %1759
    %1761 = vrot.lane.b32.xlu0 %v1151, 126
    %v1762 = vpop.permute.xlu0 %1761
    %1763 = vrot.lane.b32.xlu0 %v1152, 126
    %v1764 = vpop.permute.xlu0 %1763
    %1765 = vrot.lane.b32.xlu0 %v1153, 126
    %v1766 = vpop.permute.xlu0 %1765
    %v1776 = vsel %vm1186, %v1735, 0
    %v1779 = vsel %vm1186, %v1736, 0
    %v1782 = vsel %vm1186, %v1737, 0
    %v1785 = vsel %vm1186, %v1738, 0
    %v1788 = vsel %vm1186, %v1739, 0
    %v1791 = vsel %vm1186, %v1740, 0
    %v1794 = vsel %vm1186, %v1741, 0
    %v1797 = vsel %vm1186, %v1742, 0
    %v1800 = vsel %vm1186, %v1743, 0
    %v1803 = vsel %vm1186, %v1744, 0
    %v1806 = vsel %vm1186, %v1745, 0
    %v1809 = vsel %vm1186, %v1746, 0
    %v1812 = vsel %vm1186, %v1747, 0
    %v1815 = vsel %vm1186, %v1748, 0
    %v1818 = vsel %vm1186, %v1749, 0
    %v1821 = vsel %vm1186, %v1750, 0
    %1823 = vmatprep.subr.mxu0 0.0
    %1824 = vmatpush1.msra.mxu0 %v1752
    %1825 = vmatprep.subr.mxu0 0.0
    %1826 = vmatpush1.msra.mxu0 %v1754
    %1827 = vmatprep.subr.mxu0 0.0
    %1828 = vmatpush1.msra.mxu0 %v1756
    %1829 = vmatprep.subr.mxu0 0.0
    %1830 = vmatpush1.msra.mxu0 %v1758
    %1831 = vmatprep.subr.mxu0 0.0
    %1832 = vmatpush1.msra.mxu0 %v1760
    %1833 = vmatprep.subr.mxu0 0.0
    %1834 = vmatpush1.msra.mxu0 %v1762
    %1835 = vmatprep.subr.mxu0 0.0
    %1836 = vmatpush1.msra.mxu0 %v1764
    %1837 = vmatprep.subr.mxu0 0.0
    %1838 = vmatpush1.msra.mxu0 %v1766
    %1839 = vmatprep.subr.mxu0 0.0
    %1840 = vmatpush1.msra.mxu0 0.0
    %1841 = vmatprep.subr.mxu0 0.0
    %1842 = vmatpush1.msra.mxu0 0.0
    %1843 = vmatprep.subr.mxu0 0.0
    %1844 = vmatpush1.msra.mxu0 0.0
    %1845 = vmatprep.subr.mxu0 0.0
    %1846 = vmatpush1.msra.mxu0 0.0
    %1847 = vmatprep.subr.mxu0 0.0
    %1848 = vmatpush1.msra.mxu0 0.0
    %1849 = vmatprep.subr.mxu0 0.0
    %1850 = vmatpush1.msra.mxu0 0.0
    %1851 = vmatprep.subr.mxu0 0.0
    %1852 = vmatpush1.msra.mxu0 0.0
    %1853 = vmatprep.subr.mxu0 0.0
    %1854 = vmatpush1.msra.mxu0 0.0
    %1855 = vmatprep.subr.mxu0 0.0
    %1856 = vmatpush1.msra.mxu0 0.0
    %1857 = vmatprep.subr.mxu0 0.0
    %1858 = vmatpush1.msra.mxu0 0.0
    %1859 = vmatprep.subr.mxu0 0.0
    %1860 = vmatpush1.msra.mxu0 0.0
    %1861 = vmatprep.subr.mxu0 0.0
    %1862 = vmatpush1.msra.mxu0 0.0
    %1863 = vmatprep.subr.mxu0 0.0
    %1864 = vmatpush1.msra.mxu0 0.0
    %1865 = vmatprep.subr.mxu0 0.0
    %1866 = vmatpush1.msra.mxu0 0.0
    %1867 = vmatprep.subr.mxu0 0.0
    %1868 = vmatpush1.msra.mxu0 0.0
    %1869 = vmatprep.subr.mxu0 0.0
    %1870 = vmatpush1.msra.mxu0 0.0
    %1871 = vmatprep.subr.mxu0 0.0
    %1872 = vmatpush1.msra.mxu0 0.0
    %1873 = vmatprep.subr.mxu0 0.0
    %1874 = vmatpush1.msra.mxu0 0.0
    %1875 = vmatprep.subr.mxu0 0.0
    %1876 = vmatpush1.msra.mxu0 0.0
    %1877 = vmatprep.subr.mxu0 0.0
    %1878 = vmatpush1.msra.mxu0 0.0
    %1879 = vmatprep.subr.mxu0 0.0
    %1880 = vmatpush1.msra.mxu0 0.0
    %1881 = vmatprep.subr.mxu0 0.0
    %1882 = vmatpush1.msra.mxu0 0.0
    %1883 = vmatprep.subr.mxu0 0.0
    %1884 = vmatpush1.msra.mxu0 0.0
    %1885 = vmatprep.subr.mxu0 0.0
    %1886 = vmatpush1.msra.mxu0 0.0
    %1887 = vmatprep.mubr.f32.mxu0 0.0
    %1888 = vmatmul.mubr.f32.gmra.mrb[0].mxu0 %v1776
    %v1889 = vpop.f32.mrb[0].mxu0
    %v1890 = vadd.f32 0.0, %v1889
    %v1891 = vpop.f32.mrb[0].mxu0
    %1892 = vmatprep.mubr.f32.mxu0 0.0
    %1893 = vmatmul.mubr.f32.gmra.mrb[0].mxu0 %v1779
    %v1894 = vpop.f32.mrb[0].mxu0
    %v1895 = vadd.f32 0.0, %v1894
    %v1896 = vpop.f32.mrb[0].mxu0
    %1897 = vmatprep.mubr.f32.mxu0 0.0
    %1898 = vmatmul.mubr.f32.gmra.mrb[0].mxu0 %v1782
    %v1899 = vpop.f32.mrb[0].mxu0
    %v1900 = vadd.f32 0.0, %v1899
    %v1901 = vpop.f32.mrb[0].mxu0
    %1902 = vmatprep.mubr.f32.mxu0 0.0
    %1903 = vmatmul.mubr.f32.gmra.mrb[0].mxu0 %v1785
    %v1904 = vpop.f32.mrb[0].mxu0
    %v1905 = vadd.f32 0.0, %v1904
    %v1906 = vpop.f32.mrb[0].mxu0
    %1907 = vmatprep.mubr.f32.mxu0 0.0
    %1908 = vmatmul.mubr.f32.gmra.mrb[0].mxu0 %v1788
    %v1909 = vpop.f32.mrb[0].mxu0
    %v1910 = vadd.f32 0.0, %v1909
    %v1911 = vpop.f32.mrb[0].mxu0
    %1912 = vmatprep.mubr.f32.mxu0 0.0
    %1913 = vmatmul.mubr.f32.gmra.mrb[0].mxu0 %v1791
    %v1914 = vpop.f32.mrb[0].mxu0
    %v1915 = vadd.f32 0.0, %v1914
    %v1916 = vpop.f32.mrb[0].mxu0
    %1917 = vmatprep.mubr.f32.mxu0 0.0
    %1918 = vmatmul.mubr.f32.gmra.mrb[0].mxu0 %v1794
    %v1919 = vpop.f32.mrb[0].mxu0
    %v1920 = vadd.f32 0.0, %v1919
    %v1921 = vpop.f32.mrb[0].mxu0
    %1922 = vmatprep.mubr.f32.mxu0 0.0
    %1923 = vmatmul.mubr.f32.gmra.mrb[0].mxu0 %v1797
    %v1924 = vpop.f32.mrb[0].mxu0
    %v1925 = vadd.f32 0.0, %v1924
    %v1926 = vpop.f32.mrb[0].mxu0
    %1927 = vmatprep.mubr.f32.mxu0 0.0
    %1928 = vmatmul.mubr.f32.gmra.mrb[0].mxu0 %v1800
    %v1929 = vpop.f32.mrb[0].mxu0
    %v1930 = vadd.f32 0.0, %v1929
    %v1931 = vpop.f32.mrb[0].mxu0
    %1932 = vmatprep.mubr.f32.mxu0 0.0
    %1933 = vmatmul.mubr.f32.gmra.mrb[0].mxu0 %v1803
    %v1934 = vpop.f32.mrb[0].mxu0
    %v1935 = vadd.f32 0.0, %v1934
    %v1936 = vpop.f32.mrb[0].mxu0
    %1937 = vmatprep.mubr.f32.mxu0 0.0
    %1938 = vmatmul.mubr.f32.gmra.mrb[0].mxu0 %v1806
    %v1939 = vpop.f32.mrb[0].mxu0
    %v1940 = vadd.f32 0.0, %v1939
    %v1941 = vpop.f32.mrb[0].mxu0
    %1942 = vmatprep.mubr.f32.mxu0 0.0
    %1943 = vmatmul.mubr.f32.gmra.mrb[0].mxu0 %v1809
    %v1944 = vpop.f32.mrb[0].mxu0
    %v1945 = vadd.f32 0.0, %v1944
    %v1946 = vpop.f32.mrb[0].mxu0
    %1947 = vmatprep.mubr.f32.mxu0 0.0
    %1948 = vmatmul.mubr.f32.gmra.mrb[0].mxu0 %v1812
    %v1949 = vpop.f32.mrb[0].mxu0
    %v1950 = vadd.f32 0.0, %v1949
    %v1951 = vpop.f32.mrb[0].mxu0
    %1952 = vmatprep.mubr.f32.mxu0 0.0
    %1953 = vmatmul.mubr.f32.gmra.mrb[0].mxu0 %v1815
    %v1954 = vpop.f32.mrb[0].mxu0
    %v1955 = vadd.f32 0.0, %v1954
    %v1956 = vpop.f32.mrb[0].mxu0
    %1957 = vmatprep.mubr.f32.mxu0 0.0
    %1958 = vmatmul.mubr.f32.gmra.mrb[0].mxu0 %v1818
    %v1959 = vpop.f32.mrb[0].mxu0
    %v1960 = vadd.f32 0.0, %v1959
    %v1961 = vpop.f32.mrb[0].mxu0
    %1962 = vmatprep.mubr.f32.mxu0 0.0
    %1963 = vmatmul.mubr.f32.gmra.mrb[0].mxu0 %v1821
    %v1964 = vpop.f32.mrb[0].mxu0
    %v1965 = vadd.f32 0.0, %v1964
    %v1966 = vpop.f32.mrb[0].mxu0
    %1967 = vdwg.mxu0
    %v1968 = vadd.f32 %v1718, %v1890
    %v1969 = vadd.f32 %v1719, %v1895
    %v1970 = vadd.f32 %v1720, %v1900
    %v1971 = vadd.f32 %v1721, %v1905
    %v1972 = vadd.f32 %v1722, %v1910
    %v1973 = vadd.f32 %v1723, %v1915
    %v1974 = vadd.f32 %v1724, %v1920
    %v1975 = vadd.f32 %v1725, %v1925
    %v1976 = vadd.f32 %v1726, %v1930
    %v1977 = vadd.f32 %v1727, %v1935
    %v1978 = vadd.f32 %v1728, %v1940
    %v1979 = vadd.f32 %v1729, %v1945
    %v1980 = vadd.f32 %v1730, %v1950
    %v1981 = vadd.f32 %v1731, %v1955
    %v1982 = vadd.f32 %v1732, %v1960
    %v1983 = vadd.f32 %v1733, %v1965
    %v1984 = vmax.f32 %v1968, 0.0
    %v1985 = vmax.f32 %v1969, 0.0
    %v1986 = vmax.f32 %v1970, 0.0
    %v1987 = vmax.f32 %v1971, 0.0
    %v1988 = vmax.f32 %v1972, 0.0
    %v1989 = vmax.f32 %v1973, 0.0
    %v1990 = vmax.f32 %v1974, 0.0
    %v1991 = vmax.f32 %v1975, 0.0
    %v1992 = vmax.f32 %v1976, 0.0
    %v1993 = vmax.f32 %v1977, 0.0
    %v1994 = vmax.f32 %v1978, 0.0
    %v1995 = vmax.f32 %v1979, 0.0
    %v1996 = vmax.f32 %v1980, 0.0
    %v1997 = vmax.f32 %v1981, 0.0
    %v1998 = vmax.f32 %v1982, 0.0
    %v1999 = vmax.f32 %v1983, 0.0
    %vm2000 = vcmask 228352
    %2001 = vst.msk [vmem:[%s10] sm:$0xff] %vm2000, %v1984
    %2002 = vst.msk [vmem:[%s10 + $0x8] sm:$0xff] %vm2000, %v1985
    %2003 = vst.msk [vmem:[%s10 + $0x10] sm:$0xff] %vm2000, %v1986
    %2004 = vst.msk [vmem:[%s10 + $0x18] sm:$0xff] %vm2000, %v1987
    %2005 = vst.msk [vmem:[%s10 + $0x20] sm:$0xff] %vm2000, %v1988
    %2006 = vst.msk [vmem:[%s10 + $0x28] sm:$0xff] %vm2000, %v1989
    %2007 = vst.msk [vmem:[%s10 + $0x30] sm:$0xff] %vm2000, %v1990
    %2008 = vst.msk [vmem:[%s10 + $0x38] sm:$0xff] %vm2000, %v1991
    %2009 = vst.msk [vmem:[%s10 + $0x40] sm:$0xff] %vm2000, %v1992
    %2010 = vst.msk [vmem:[%s10 + $0x48] sm:$0xff] %vm2000, %v1993
    %2011 = vst.msk [vmem:[%s10 + $0x50] sm:$0xff] %vm2000, %v1994
    %2012 = vst.msk [vmem:[%s10 + $0x58] sm:$0xff] %vm2000, %v1995
    %2013 = vst.msk [vmem:[%s10 + $0x60] sm:$0xff] %vm2000, %v1996
    %2014 = vst.msk [vmem:[%s10 + $0x68] sm:$0xff] %vm2000, %v1997
    %2015 = vst.msk [vmem:[%s10 + $0x70] sm:$0xff] %vm2000, %v1998
    %2016 = vst.msk [vmem:[%s10 + $0x78] sm:$0xff] %vm2000, %v1999
    // Predicated region
    $region38: #{convnet_forward.1} parent=1 // pred_check
      _
    $region39: #{convnet_forward.1} parent=1 // pred_check_branch
      %2018 = sbr.rel (0) target = $region41
    $region40: #{convnet_forward.1} parent=1 // pred_region
      %s2020 = ssub.s32 512, 512
      %2021 = vsyncadd [#allocation4], %s2020
      %s2022 = sshll.u32 [#allocation3], 4
      %s2023 = int_to_ptr.vmem [resolvable:$true] %s2022
      %2028 = dma.vmem_to_hbm [thread:$0]  %s2023, 512, %s9, [#allocation4], 128, 128, 8
    $region41: #{convnet_forward.1} parent=1 // pred_fallthru
      _
    // Predicated region
    $region42: #{convnet_forward.1} parent=1 // pred_check
      _
    $region43: #{convnet_forward.1} parent=1 // pred_check_branch
      %2030 = sbr.rel (0) target = $region45
    $region44: #{convnet_forward.1} parent=1 // pred_region
      _
    $region45: #{convnet_forward.1} parent=1 // pred_fallthru
      _
    // Predicated region
    $region46: #{convnet_forward.1} parent=1 // pred_check
      _
    $region47: #{convnet_forward.1} parent=1 // pred_check_branch
      %2032 = sbr.rel (0) target = $region49
    $region48: #{convnet_forward.1} parent=1 // pred_region
      %2033 = dma.done [#allocation4], 512
    $region49: #{convnet_forward.1} parent=1 // pred_fallthru
      _
    // Predicated region
    $region50: #{convnet_forward.1} parent=1 // pred_check
      _
    $region51: #{convnet_forward.1} parent=1 // pred_check_branch
      %2035 = sbr.rel (0) target = $region53
    $region52: #{convnet_forward.1} parent=1 // pred_region
      _
    $region53: #{convnet_forward.1} parent=1 // pred_fallthru
      _
    %2036 = vsyncpa [#allocation4], 1

</llo_original>
